<compile_context>
chip_gen: v7x
topology: tpu7x:2x2x1
jax: 0.10.0
libtpu: 0.0.40
codegen_flags: <defaults>
</compile_context>

<pallas_src>
import jax
import jax.numpy as jnp
from jax import lax
from jax.experimental import pallas as pl
from jax.experimental.pallas import tpu as pltpu

_INV_SQRT2 = 0.7071067811865476


def stacked_head_kernel(x_ref, pw_ref, w1_ref, b1_ref, w2_ref, b2_ref,
                        out_ref, m_sc, l_sc, acc_sc):
    """Online-softmax attention pooling over seq tiles, then fused MLP head."""
    s_idx = pl.program_id(1)

    @pl.when(s_idx == 0)
    def _init():
        m_sc[...] = jnp.full(m_sc.shape, -jnp.inf, m_sc.dtype)
        l_sc[...] = jnp.zeros(l_sc.shape, l_sc.dtype)
        acc_sc[...] = jnp.zeros(acc_sc.shape, acc_sc.dtype)

    x = x_ref[...]                                   # [TB, TS, F]
    tb, _, feat = x.shape
    pw = jnp.broadcast_to(pw_ref[...][:, None, :], (tb, 1, feat))   # [TB, 1, F]

    # attention logits on the MXU: s[b, 1, t] = sum_f pw[f] * x[b, t, f]
    s = jnp.einsum("bqf,btf->bqt", pw, x, preferred_element_type=jnp.float32)

    # flash-style online softmax over the (tiled) sequence axis
    m_prev = m_sc[...]                               # [TB, 1, 1]
    m_new = jnp.maximum(m_prev, jnp.max(s, axis=-1, keepdims=True))
    alpha = jnp.exp(m_prev - m_new)
    p = jnp.exp(s - m_new)                           # [TB, 1, TS]
    l_sc[...] = alpha * l_sc[...] + jnp.sum(p, axis=-1, keepdims=True)
    # weighted partial sum on the MXU: [TB,1,TS] @ [TB,TS,F] -> [TB,1,F]
    acc_sc[...] = alpha * acc_sc[...] + jnp.einsum(
        "bqt,btf->bqf", p, x, preferred_element_type=jnp.float32)
    m_sc[...] = m_new

    @pl.when(s_idx == pl.num_programs(1) - 1)
    def _finalize():
        # softmax normalization: approx reciprocal runs on the (idle) EUP slot
        pooled = (acc_sc[...] * pl.reciprocal(l_sc[...], approx=True))[:, 0, :]
        # Linear(+folded BN) -> exact GELU -> Linear(+folded BN) -> Sigmoid
        h = jnp.dot(pooled, w1_ref[...],
                    preferred_element_type=jnp.float32) + b1_ref[...]
        h = 0.5 * h * (1.0 + lax.erf(h * _INV_SQRT2))          # PyTorch-default GELU
        o = jnp.dot(h, w2_ref[...],
                    preferred_element_type=jnp.float32) + b2_ref[...]
        out_ref[...] = 1.0 / (1.0 + jnp.exp(-o))               # sigmoid


def stack_model_forward(x, p, *, tb=8, ts=None):
    """x: [B, S, F] float32 features. Returns {'high': [B, 9]}."""
    B, S, F = x.shape
    E = p["w1"].shape[1]
    O = p["w2"].shape[1]

    # --- host-side prep: fold eval-mode BatchNorm into the Linears -------------
    w1 = p["w1"] * p["bn1_scale"]                     # [F, E]
    b1 = p["b1"] * p["bn1_scale"] + p["bn1_shift"]    # [1, E]
    w2 = p["w2"] * p["bn2_scale"]                     # [E, O]
    b2 = p["b2"] * p["bn2_scale"] + p["bn2_shift"]    # [1, O]

    # Lane-dense head output: pad O (=9) up to a multiple of 128 (sliced back).
    o_pad = max(128, ((O + 127) // 128) * 128)
    w2p = jnp.zeros((E, o_pad), w2.dtype).at[:, :O].set(w2)
    b2p = jnp.zeros((1, o_pad), b2.dtype).at[:, :O].set(b2)

    # --- tiling -----------------------------------------------------------------
    # Batch tile must be a multiple of 8 (sublane rule for the [TB, o_pad] output
    # block); pad B with zero rows if needed (garbage rows sliced off below).
    tb = max(8, (tb // 8) * 8)
    b_pad = ((B + tb - 1) // tb) * tb
    if b_pad != B:
        x = jnp.pad(x, ((0, b_pad - B), (0, 0), (0, 0)))
    # Sequence tile: largest standard tile that divides S, else the full sequence.
    if ts is None:
        ts = next((c for c in (512, 256, 128, 64, 32, 16, 8) if S % c == 0), S)
    if S % ts != 0:
        # TODO(synk): add in-kernel masking for ragged sequence lengths instead of
        # falling back to a single full-sequence tile.
        ts = S

    grid = (b_pad // tb, S // ts)

    cost = pl.CostEstimate(
        flops=4 * b_pad * S * F + 2 * b_pad * (F * E + E * o_pad),
        transcendentals=b_pad * (S + E),
        bytes_accessed=4 * (b_pad * S * F + F * E + E * o_pad + b_pad * o_pad),
    )

    high_padded = pl.pallas_call(
        stacked_head_kernel,
        out_shape=jax.ShapeDtypeStruct((b_pad, o_pad), jnp.float32),
        grid_spec=pltpu.PrefetchScalarGridSpec(
            num_scalar_prefetch=0,
            grid=grid,
            in_specs=[
                # x: the only large, pipelined stream (double-buffered by Pallas)
                pl.BlockSpec((tb, ts, F), lambda b, s: (b, s, 0)),
                # weights/bias: constant index_map -> DMA'd once, resident in VMEM
                pl.BlockSpec((1, F), lambda b, s: (0, 0)),        # pool weight
                pl.BlockSpec((F, E), lambda b, s: (0, 0)),        # fused W1
                pl.BlockSpec((1, E), lambda b, s: (0, 0)),        # fused b1
                pl.BlockSpec((E, o_pad), lambda b, s: (0, 0)),    # fused padded W2
                pl.BlockSpec((1, o_pad), lambda b, s: (0, 0)),    # fused padded b2
            ],
            out_specs=pl.BlockSpec((tb, o_pad), lambda b, s: (b, 0)),
            scratch_shapes=[
                pltpu.VMEM((tb, 1, 1), jnp.float32),   # running max
                pltpu.VMEM((tb, 1, 1), jnp.float32),   # running sum
                pltpu.VMEM((tb, 1, F), jnp.float32),   # pooled accumulator
            ],
        ),
        compiler_params=pltpu.CompilerParams(
            dimension_semantics=("parallel", "arbitrary"),   # batch across TCs (v7x)
            vmem_limit_bytes=48 * 1024 * 1024,               # safe on v5e/v6e/v7x
        ),
        cost_estimate=cost,
    )(x, p["pool_w"], w1, b1, w2p, b2p)

    return {"high": high_padded[:B, :O]}


def init_params(key, feat_dim, embedding_size, out_dim=9):
    """Synthetic params matching StackedModule shapes; non-trivial BN stats so the
    host-side BN fold is actually exercised against the unfused reference."""
    ks = jax.random.split(key, 13)
    eps = 1e-5
    bn1_gamma = 1.0 + 0.1 * jax.random.normal(ks[5], (embedding_size,), jnp.float32)
    bn1_beta = 0.1 * jax.random.normal(ks[6], (embedding_size,), jnp.float32)
    bn1_mean = 0.1 * jax.random.normal(ks[7], (embedding_size,), jnp.float32)
    bn1_var = 0.5 + jax.random.uniform(ks[8], (embedding_size,), jnp.float32)
    bn2_gamma = 1.0 + 0.1 * jax.random.normal(ks[9], (out_dim,), jnp.float32)
    bn2_beta = 0.1 * jax.random.normal(ks[10], (out_dim,), jnp.float32)
    bn2_mean = 0.1 * jax.random.normal(ks[11], (out_dim,), jnp.float32)
    bn2_var = 0.5 + jax.random.uniform(ks[12], (out_dim,), jnp.float32)

    s1 = bn1_gamma / jnp.sqrt(bn1_var + eps)
    t1 = bn1_beta - bn1_mean * s1
    s2 = bn2_gamma / jnp.sqrt(bn2_var + eps)
    t2 = bn2_beta - bn2_mean * s2

    return {
        # self.pools = nn.Linear(feat_dim, 1, bias=False) -> weight [1, feat_dim]
        "pool_w": (jax.random.normal(ks[0], (1, feat_dim), jnp.float32)
                   * (1.0 / jnp.sqrt(feat_dim))),
        # nn.Linear(feat_dim, embedding_size)  (stored transposed: [F, E])
        "w1": (jax.random.normal(ks[1], (feat_dim, embedding_size), jnp.float32)
               * (1.0 / jnp.sqrt(feat_dim))),
        "b1": jax.random.normal(ks[2], (1, embedding_size), jnp.float32) * 0.01,
        "bn1_scale": s1.reshape(1, embedding_size),
        "bn1_shift": t1.reshape(1, embedding_size),
        # nn.Linear(embedding_size, 9)  (stored transposed: [E, 9])
        "w2": (jax.random.normal(ks[3], (embedding_size, out_dim), jnp.float32)
               * (1.0 / jnp.sqrt(embedding_size))),
        "b2": jax.random.normal(ks[4], (1, out_dim), jnp.float32) * 0.01,
        "bn2_scale": s2.reshape(1, out_dim),
        "bn2_shift": t2.reshape(1, out_dim),
    }


def reference_forward(x, p):
    """Pure-JAX reference of the same math (BN applied unfused)."""
    logits = jnp.einsum("bsf,f->bs", x, p["pool_w"][0])
    w = jax.nn.softmax(logits, axis=1)
    pooled = jnp.einsum("bs,bsf->bf", w, x)
    h = pooled @ p["w1"] + p["b1"]
    h = h * p["bn1_scale"] + p["bn1_shift"]
    h = 0.5 * h * (1.0 + lax.erf(h * _INV_SQRT2))
    o = h @ p["w2"] + p["b2"]
    o = o * p["bn2_scale"] + p["bn2_shift"]
    return jax.nn.sigmoid(o)


if __name__ == "__main__":
    # Small shapes consistent with [B, seqlen, feat_dim]; sized so the grid has
    # 2 batch tiles (parallel axis) and 2 sequence tiles (online softmax path).
    B, S, FEAT, EMB = 16, 16, 128, 128
    TB, TS = 8, 8
    key = jax.random.PRNGKey(0)
    kx, kp = jax.random.split(key)
    x = jax.random.normal(kx, (B, S, FEAT), jnp.float32)
    params = init_params(kp, FEAT, EMB)

    out = stack_model_forward(x, params, tb=TB, ts=TS)
    high = jax.block_until_ready(out["high"])

    ref = reference_forward(x, params)
    assert high.shape == (B, 9)
    # approx reciprocal (EUP) in the softmax normalization -> slightly loosened tol
    assert jnp.allclose(high, ref, atol=5e-3, rtol=5e-3), "mismatch vs reference"
    print("KERNEL_OK")
</pallas_src>

<mosaic_0001>
module attributes {stable_mosaic.version = 11 : i64} {
  func.func @stacked_head_kernel(%arg0: i32, %arg1: i32, %arg2: memref<8x8x128xf32, #tpu.memory_space<vmem>>, %arg3: memref<1x128xf32, #tpu.memory_space<vmem>>, %arg4: memref<128x128xf32, #tpu.memory_space<vmem>>, %arg5: memref<1x128xf32, #tpu.memory_space<vmem>>, %arg6: memref<128x128xf32, #tpu.memory_space<vmem>>, %arg7: memref<1x128xf32, #tpu.memory_space<vmem>>, %arg8: memref<8x128xf32, #tpu.memory_space<vmem>>, %arg9: memref<8x1x1xf32, #tpu.memory_space<vmem>>, %arg10: memref<8x1x1xf32, #tpu.memory_space<vmem>>, %arg11: memref<8x1x128xf32, #tpu.memory_space<vmem>>) attributes {dimension_semantics = [#tpu.dimension_semantics<parallel>, #tpu.dimension_semantics<arbitrary>], iteration_bounds = array<i64: 2, 2>, scalar_prefetch = 0 : i64, scratch_operands = 3 : i64, tpu.core_type = #tpu.core_type<tc>, window_params = [{transform_indices = @transform_0, window_bounds = array<i64: 8, 8, 128>}, {pipeline_mode = #tpu.pipeline_mode<synchronous>, transform_indices = @transform_1, window_bounds = array<i64: 1, 128>}, {pipeline_mode = #tpu.pipeline_mode<synchronous>, transform_indices = @transform_2, window_bounds = array<i64: 128, 128>}, {pipeline_mode = #tpu.pipeline_mode<synchronous>, transform_indices = @transform_3, window_bounds = array<i64: 1, 128>}, {pipeline_mode = #tpu.pipeline_mode<synchronous>, transform_indices = @transform_4, window_bounds = array<i64: 128, 128>}, {pipeline_mode = #tpu.pipeline_mode<synchronous>, transform_indices = @transform_5, window_bounds = array<i64: 1, 128>}, {transform_indices = @transform_6, window_bounds = array<i64: 8, 128>}]} {
    %c0_i32 = arith.constant 0 : i32
    %0 = arith.cmpi eq, %arg1, %c0_i32 : i32
    %1 = arith.extui %0 : i1 to i32
    %c0_i32_0 = arith.constant 0 : i32
    %2 = arith.cmpi ne, %1, %c0_i32_0 : i32
    scf.if %2 {
      %cst_27 = arith.constant 0xFF800000 : f32
      %34 = vector.broadcast %cst_27 : f32 to vector<8x1x1xf32>
      %c0_28 = arith.constant 0 : index
      %c0_29 = arith.constant 0 : index
      %c0_30 = arith.constant 0 : index
      %35 = vector.load %arg9[%c0_28, %c0_29, %c0_30] : memref<8x1x1xf32, #tpu.memory_space<vmem>>, vector<8x1x1xf32>
      tpu.vector_store %arg9[%c0_28, %c0_29, %c0_30], %34 {strides = array<i32>} : memref<8x1x1xf32, #tpu.memory_space<vmem>>, vector<8x1x1xf32>,
      %cst_31 = arith.constant 0.000000e+00 : f32
      %36 = vector.broadcast %cst_31 : f32 to vector<8x1x1xf32>
      %c0_32 = arith.constant 0 : index
      %c0_33 = arith.constant 0 : index
      %c0_34 = arith.constant 0 : index
      %37 = vector.load %arg10[%c0_32, %c0_33, %c0_34] : memref<8x1x1xf32, #tpu.memory_space<vmem>>, vector<8x1x1xf32>
      tpu.vector_store %arg10[%c0_32, %c0_33, %c0_34], %36 {strides = array<i32>} : memref<8x1x1xf32, #tpu.memory_space<vmem>>, vector<8x1x1xf32>,
      %cst_35 = arith.constant 0.000000e+00 : f32
      %38 = vector.broadcast %cst_35 : f32 to vector<8x1x128xf32>
      %c0_36 = arith.constant 0 : index
      %c0_37 = arith.constant 0 : index
      %c0_38 = arith.constant 0 : index
      %39 = vector.load %arg11[%c0_36, %c0_37, %c0_38] : memref<8x1x128xf32, #tpu.memory_space<vmem>>, vector<8x1x128xf32>
      tpu.vector_store %arg11[%c0_36, %c0_37, %c0_38], %38 {strides = array<i32>} : memref<8x1x128xf32, #tpu.memory_space<vmem>>, vector<8x1x128xf32>,
    } else {
    }
    %c0 = arith.constant 0 : index
    %c0_1 = arith.constant 0 : index
    %c0_2 = arith.constant 0 : index
    %3 = vector.load %arg2[%c0, %c0_1, %c0_2] : memref<8x8x128xf32, #tpu.memory_space<vmem>>, vector<8x8x128xf32>
    %c0_3 = arith.constant 0 : index
    %c0_4 = arith.constant 0 : index
    %4 = vector.load %arg3[%c0_3, %c0_4] : memref<1x128xf32, #tpu.memory_space<vmem>>, vector<1x128xf32>
    %5 = vector.shape_cast %4 : vector<1x128xf32> to vector<1x1x128xf32>
    %6 = vector.shape_cast %5 : vector<1x1x128xf32> to vector<1x1x128xf32>
    %7 = vector.broadcast %6 : vector<1x1x128xf32> to vector<8x1x128xf32>
    "tpu.trace_start"() <{level = 10 : i32, message = "bqf,btf->bqt"}> : () -> ()
    %cst = arith.constant dense<0.000000e+00> : vector<8x1x8xf32>
    %8 = tpu.matmul %7, %3, %cst {dimension_numbers = #tpu.dot_dimension_numbers<[2], [2], [1], [1], [0, 0, 0, 1, 1, 1], [0], [0]>} : vector<8x1x128xf32>, vector<8x8x128xf32>, vector<8x1x8xf32> -> vector<8x1x8xf32>
    "tpu.trace_stop"() : () -> ()
    %c0_5 = arith.constant 0 : index
    %c0_6 = arith.constant 0 : index
    %c0_7 = arith.constant 0 : index
    %9 = vector.load %arg9[%c0_5, %c0_6, %c0_7] : memref<8x1x1xf32, #tpu.memory_space<vmem>>, vector<8x1x1xf32>
    %cst_8 = arith.constant dense<0xFF800000> : vector<8x1xf32>
    %10 = vector.multi_reduction <maximumf>, %8, %cst_8 [2] : vector<8x1x8xf32> to vector<8x1xf32>
    %11 = vector.shape_cast %10 : vector<8x1xf32> to vector<8x1x1xf32>
    %12 = arith.maximumf %9, %11 : vector<8x1x1xf32>
    %13 = arith.subf %9, %12 : vector<8x1x1xf32>
    %14 = math.exp %13 : vector<8x1x1xf32>
    %15 = vector.broadcast %12 : vector<8x1x1xf32> to vector<8x1x8xf32>
    %16 = arith.subf %8, %15 : vector<8x1x8xf32>
    %17 = math.exp %16 : vector<8x1x8xf32>
    %c0_9 = arith.constant 0 : index
    %c0_10 = arith.constant 0 : index
    %c0_11 = arith.constant 0 : index
    %18 = vector.load %arg10[%c0_9, %c0_10, %c0_11] : memref<8x1x1xf32, #tpu.memory_space<vmem>>, vector<8x1x1xf32>
    %19 = arith.mulf %14, %18 : vector<8x1x1xf32>
    %cst_12 = arith.constant dense<0.000000e+00> : vector<8x1xf32>
    %20 = vector.multi_reduction <add>, %17, %cst_12 [2] : vector<8x1x8xf32> to vector<8x1xf32>
    %21 = vector.shape_cast %20 : vector<8x1xf32> to vector<8x1x1xf32>
    %22 = arith.addf %19, %21 : vector<8x1x1xf32>
    %c0_13 = arith.constant 0 : index
    %c0_14 = arith.constant 0 : index
    %c0_15 = arith.constant 0 : index
    %23 = vector.load %arg10[%c0_13, %c0_14, %c0_15] : memref<8x1x1xf32, #tpu.memory_space<vmem>>, vector<8x1x1xf32>
    tpu.vector_store %arg10[%c0_13, %c0_14, %c0_15], %22 {strides = array<i32>} : memref<8x1x1xf32, #tpu.memory_space<vmem>>, vector<8x1x1xf32>,
    %c0_16 = arith.constant 0 : index
    %c0_17 = arith.constant 0 : index
    %c0_18 = arith.constant 0 : index
    %24 = vector.load %arg11[%c0_16, %c0_17, %c0_18] : memref<8x1x128xf32, #tpu.memory_space<vmem>>, vector<8x1x128xf32>
    %25 = vector.broadcast %14 : vector<8x1x1xf32> to vector<8x1x128xf32>
    %26 = arith.mulf %25, %24 : vector<8x1x128xf32>
    "tpu.trace_start"() <{level = 10 : i32, message = "bqt,btf->bqf"}> : () -> ()
    %cst_19 = arith.constant dense<0.000000e+00> : vector<8x1x128xf32>
    %27 = tpu.matmul %17, %3, %cst_19 {dimension_numbers = #tpu.dot_dimension_numbers<[2], [1], [1], [2], [0, 0, 0, 1, 1, 2], [0], [0]>} : vector<8x1x8xf32>, vector<8x8x128xf32>, vector<8x1x128xf32> -> vector<8x1x128xf32>
    "tpu.trace_stop"() : () -> ()
    %28 = arith.addf %26, %27 : vector<8x1x128xf32>
    %c0_20 = arith.constant 0 : index
    %c0_21 = arith.constant 0 : index
    %c0_22 = arith.constant 0 : index
    %29 = vector.load %arg11[%c0_20, %c0_21, %c0_22] : memref<8x1x128xf32, #tpu.memory_space<vmem>>, vector<8x1x128xf32>
    tpu.vector_store %arg11[%c0_20, %c0_21, %c0_22], %28 {strides = array<i32>} : memref<8x1x128xf32, #tpu.memory_space<vmem>>, vector<8x1x128xf32>,
    %c0_23 = arith.constant 0 : index
    %c0_24 = arith.constant 0 : index
    %c0_25 = arith.constant 0 : index
    %30 = vector.load %arg9[%c0_23, %c0_24, %c0_25] : memref<8x1x1xf32, #tpu.memory_space<vmem>>, vector<8x1x1xf32>
    tpu.vector_store %arg9[%c0_23, %c0_24, %c0_25], %12 {strides = array<i32>} : memref<8x1x1xf32, #tpu.memory_space<vmem>>, vector<8x1x1xf32>,
    %c1_i32 = arith.constant 1 : i32
    %31 = arith.cmpi eq, %arg1, %c1_i32 : i32
    %32 = arith.extui %31 : i1 to i32
    %c0_i32_26 = arith.constant 0 : i32
    %33 = arith.cmpi ne, %32, %c0_i32_26 : i32
    scf.if %33 {
      %c0_27 = arith.constant 0 : index
      %c0_28 = arith.constant 0 : index
      %c0_29 = arith.constant 0 : index
      %34 = vector.load %arg11[%c0_27, %c0_28, %c0_29] : memref<8x1x128xf32, #tpu.memory_space<vmem>>, vector<8x1x128xf32>
      %c0_30 = arith.constant 0 : index
      %c0_31 = arith.constant 0 : index
      %c0_32 = arith.constant 0 : index
      %35 = vector.load %arg10[%c0_30, %c0_31, %c0_32] : memref<8x1x1xf32, #tpu.memory_space<vmem>>, vector<8x1x1xf32>
      %36 = tpu.reciprocal %35 {approx = true} : vector<8x1x1xf32> -> vector<8x1x1xf32>
      %37 = vector.broadcast %36 : vector<8x1x1xf32> to vector<8x1x128xf32>
      %38 = arith.mulf %34, %37 : vector<8x1x128xf32>
      %39 = vector.shape_cast %38 : vector<8x1x128xf32> to vector<8x128xf32>
      %c0_33 = arith.constant 0 : index
      %c0_34 = arith.constant 0 : index
      %40 = vector.load %arg4[%c0_33, %c0_34] : memref<128x128xf32, #tpu.memory_space<vmem>>, vector<128x128xf32>
      %cst_35 = arith.constant dense<0.000000e+00> : vector<8x128xf32>
      %41 = tpu.matmul %39, %40, %cst_35 {dimension_numbers = #tpu.dot_dimension_numbers<[1], [0], [0], [1], [0, 0, 1, 1], [], []>} : vector<8x128xf32>, vector<128x128xf32>, vector<8x128xf32> -> vector<8x128xf32>
      %c0_36 = arith.constant 0 : index
      %c0_37 = arith.constant 0 : index
      %42 = vector.load %arg5[%c0_36, %c0_37] : memref<1x128xf32, #tpu.memory_space<vmem>>, vector<1x128xf32>
      %43 = vector.broadcast %42 : vector<1x128xf32> to vector<8x128xf32>
      %44 = arith.addf %41, %43 : vector<8x128xf32>
      %cst_38 = arith.constant 5.000000e-01 : f32
      %45 = vector.broadcast %cst_38 : f32 to vector<8x128xf32>
      %46 = arith.mulf %45, %44 : vector<8x128xf32>
      %cst_39 = arith.constant 0.707106769 : f32
      %47 = vector.broadcast %cst_39 : f32 to vector<8x128xf32>
      %48 = arith.mulf %44, %47 : vector<8x128xf32>
      %49 = math.erf %48 : vector<8x128xf32>
      %cst_40 = arith.constant 1.000000e+00 : f32
      %50 = vector.broadcast %cst_40 : f32 to vector<8x128xf32>
      %51 = arith.addf %50, %49 : vector<8x128xf32>
      %52 = arith.mulf %46, %51 : vector<8x128xf32>
      %c0_41 = arith.constant 0 : index
      %c0_42 = arith.constant 0 : index
      %53 = vector.load %arg6[%c0_41, %c0_42] : memref<128x128xf32, #tpu.memory_space<vmem>>, vector<128x128xf32>
      %cst_43 = arith.constant dense<0.000000e+00> : vector<8x128xf32>
      %54 = tpu.matmul %52, %53, %cst_43 {dimension_numbers = #tpu.dot_dimension_numbers<[1], [0], [0], [1], [0, 0, 1, 1], [], []>} : vector<8x128xf32>, vector<128x128xf32>, vector<8x128xf32> -> vector<8x128xf32>
      %c0_44 = arith.constant 0 : index
      %c0_45 = arith.constant 0 : index
      %55 = vector.load %arg7[%c0_44, %c0_45] : memref<1x128xf32, #tpu.memory_space<vmem>>, vector<1x128xf32>
      %56 = vector.broadcast %55 : vector<1x128xf32> to vector<8x128xf32>
      %57 = arith.addf %54, %56 : vector<8x128xf32>
      %cst_46 = arith.constant 0.000000e+00 : f32
      %58 = vector.broadcast %cst_46 : f32 to vector<8x128xf32>
      %59 = arith.subf %58, %57 : vector<8x128xf32>
      %60 = math.exp %59 : vector<8x128xf32>
      %cst_47 = arith.constant 1.000000e+00 : f32
      %61 = vector.broadcast %cst_47 : f32 to vector<8x128xf32>
      %62 = arith.addf %61, %60 : vector<8x128xf32>
      %cst_48 = arith.constant 1.000000e+00 : f32
      %63 = vector.broadcast %cst_48 : f32 to vector<8x128xf32>
      %64 = arith.divf %63, %62 : vector<8x128xf32>
      %c0_49 = arith.constant 0 : index
      %c0_50 = arith.constant 0 : index
      %65 = vector.load %arg8[%c0_49, %c0_50] : memref<8x128xf32, #tpu.memory_space<vmem>>, vector<8x128xf32>
      tpu.vector_store %arg8[%c0_49, %c0_50], %64 {strides = array<i32>} : memref<8x128xf32, #tpu.memory_space<vmem>>, vector<8x128xf32>,
    } else {
    }
    return
  }
  func.func @transform_0(%arg0: i32, %arg1: i32) -> (i32, i32, i32) {
    %c0_i32 = arith.constant 0 : i32
    %c0_i32_0 = arith.constant 0 : i32
    return %arg0, %arg1, %c0_i32 : i32, i32, i32
  }
  func.func @transform_1(%arg0: i32, %arg1: i32) -> (i32, i32) {
    %c0_i32 = arith.constant 0 : i32
    %c0_i32_0 = arith.constant 0 : i32
    %c0_i32_1 = arith.constant 0 : i32
    return %c0_i32, %c0_i32_0 : i32, i32
  }
  func.func @transform_2(%arg0: i32, %arg1: i32) -> (i32, i32) {
    %c0_i32 = arith.constant 0 : i32
    %c0_i32_0 = arith.constant 0 : i32
    %c0_i32_1 = arith.constant 0 : i32
    return %c0_i32, %c0_i32_0 : i32, i32
  }
  func.func @transform_3(%arg0: i32, %arg1: i32) -> (i32, i32) {
    %c0_i32 = arith.constant 0 : i32
    %c0_i32_0 = arith.constant 0 : i32
    %c0_i32_1 = arith.constant 0 : i32
    return %c0_i32, %c0_i32_0 : i32, i32
  }
  func.func @transform_4(%arg0: i32, %arg1: i32) -> (i32, i32) {
    %c0_i32 = arith.constant 0 : i32
    %c0_i32_0 = arith.constant 0 : i32
    %c0_i32_1 = arith.constant 0 : i32
    return %c0_i32, %c0_i32_0 : i32, i32
  }
  func.func @transform_5(%arg0: i32, %arg1: i32) -> (i32, i32) {
    %c0_i32 = arith.constant 0 : i32
    %c0_i32_0 = arith.constant 0 : i32
    %c0_i32_1 = arith.constant 0 : i32
    return %c0_i32, %c0_i32_0 : i32, i32
  }
  func.func @transform_6(%arg0: i32, %arg1: i32) -> (i32, i32) {
    %c0_i32 = arith.constant 0 : i32
    %c0_i32_0 = arith.constant 0 : i32
    return %arg0, %c0_i32 : i32, i32
  }
}

</mosaic_0001>

<llo_original>
// kernel: tpu_custom_call.1
$region0: #{tpu_custom_call.1}
  #allocation0 [shape = 'u32[]', space=smem, size = 0x4, offset = 0x4, fixed_abs, tag = 'smem constant byte address 0x4 - core index']
  #allocation1 [shape = 'u32[144,128]{1,0:T(1,128)}', space=vmem, size = 0x12000, scoped, tag = 'internal scratch']
  #allocation2 [shape = 'f32[8,1,1]{2,1,0:T(1,128)}', space=vmem, size = 0x1000, scoped, tag = 'scratch operand']
  #allocation3 [shape = 'f32[8,1,1]{2,1,0:T(1,128)}', space=vmem, size = 0x1000, scoped, tag = 'scratch operand']
  #allocation4 [shape = 'f32[8,1,128]{2,1,0:T(1,128)}', space=vmem, size = 0x1000, scoped, tag = 'scratch operand']
  %s0 = inlined_call_operand.hbm [shape: f32[16,16,128], index: 0, kind: input, shape index: {}]
  %s1 = inlined_call_operand.vmem [shape: f32[1,128], index: 1, kind: input, shape index: {}]
  %s2 = inlined_call_operand.hbm [shape: f32[128,128], index: 2, kind: input, shape index: {}]
  %s3 = inlined_call_operand.vmem [shape: f32[1,128], index: 3, kind: input, shape index: {}]
  %s4 = inlined_call_operand.hbm [shape: f32[128,128], index: 4, kind: input, shape index: {}]
  %s5 = inlined_call_operand.vmem [shape: f32[1,128], index: 5, kind: input, shape index: {}]
  %s6 = inlined_call_operand.hbm [shape: f32[16,128], index: 6, kind: output, shape index: {}]
  %s7 = sld [smem:[#allocation0]]
  $region77: #{tpu_custom_call.1} parent=0
    _
  %s9 = ssub.s32 1, %s7
  %s10 = scalar_select 0, %s9, %s7
  $region1: #{tpu_custom_call.1} parent=0
    #allocation5 [shape = 'u8[65536]{0}', space=vmem, size = 0x10000, scoped, tag = 'input window, operand 0']
    #allocation6 [shape = 's32[2]{0}', space=sflag, size = 0x8, scoped, tag = 'scoped memory for tpu_custom_call.1']
    #allocation7 [shape = 's32[2]{0}', space=sflag, size = 0x8, scoped, tag = 'scoped memory for tpu_custom_call.1']
    #allocation8 [shape = 'u8[65536]{0}', space=vmem, size = 0x10000, scoped, tag = 'input window, operand 2, single buffered']
    #allocation9 [shape = 's32[1]{0}', space=sflag, size = 0x4, scoped, tag = 'scoped memory for tpu_custom_call.1']
    #allocation10 [shape = 'u8[65536]{0}', space=vmem, size = 0x10000, scoped, tag = 'input window, operand 4, single buffered']
    #allocation11 [shape = 'u8[8192]{0}', space=vmem, size = 0x2000, scoped, tag = 'output window, operand 0']
    %11 = vsyncpa [#allocation6], 0
    %s12 = scalar_lea.sflag [#allocation6], 1
    %13 = vsyncpa %s12, 0
    %14 = vsyncpa [#allocation9], 0
    %15 = vsyncpa [#allocation7], 0
    %s16 = scalar_lea.sflag [#allocation7], 1
    %17 = vsyncpa %s16, 0
    loop: start=0, step=1, limit=6
    $region2: #{tpu_custom_call.1} parent=1 // loop_pre_header
      _
    $region3: #{tpu_custom_call.1} parent=1 // loop_header
      %s19 = sphi 0, %s23
      %p20 = scmp.ge.s32.totalorder %s19, 6
      %s26 = sphi 0, %s38
      %s27 = sphi 0, %s34
      %s28 = sphi 0, %s26
      %s29 = sphi 0, %s27
      %s30 = sphi 0, %s28
      %s31 = sphi 0, %s29
      %s43 = sphi 0, %s45
      %s46 = sphi 0, %s43
      %s47 = sphi 0, %s46
      %s63 = sphi 0, %s47
      %s67 = sphi 0, %s67
      %s69 = sphi 0, %s67
      %s70 = sphi 0, %s69
      %s84 = sphi 0, %s70
      %s88 = sphi 0, %s88
      %s90 = sphi 0, %s88
      %s91 = sphi 0, %s90
      %s105 = sphi 0, %s91
      %s109 = sphi 0, %s109
      %s111 = sphi 0, %s109
      %s112 = sphi 0, %s111
      %s126 = sphi 0, %s112
      %s130 = sphi 0, %s130
      %s132 = sphi 0, %s130
      %s133 = sphi 0, %s132
      %s147 = sphi 0, %s133
      %s151 = sphi 0, %s151
      %s153 = sphi 0, %s151
      %s154 = sphi 0, %s153
      %s168 = sphi 0, %s154
      %s174 = sphi 0, %s176
      %s177 = sphi 0, %s174
      %s178 = sphi 0, %s177
      %s194 = sphi 0, %s178
    $region4: #{tpu_custom_call.1} parent=1 // loop_header_branch
      %22 = sbr.rel (%p20) target = $region8
    $region5: #{tpu_custom_call.1} parent=1 // loop_body
      %s24 = ssub.s32 %s19, 1
      %s25 = ssub.s32 %s19, 2
      %s32 = sadd.s32 1, %s27
      %p33 = scmp.ge.s32.totalorder %s32, 2
      %s34 = scalar_select %p33, 0, %s32
      %s35 = sadd.s32 1, %s26
      %s36 = scalar_select %p33, %s35, %s26
      %p37 = scmp.ge.s32.totalorder %s36, 2
      %s38 = scalar_select %p37, 0, %s36
      %s39 = ssub.s32 %s26, %s38
      %s40 = ssub.s32 %s27, %s34
      %s41 = sor.u32 %s39, %s40
      %p42 = scmp.eq.s32.totalorder %s41, 0
      %s44 = sadd.s32 %s43, 1
      %s45 = scalar_select %p42, %s43, %s44
      %p48 = pneg %p42
      %p49 = scmp.eq.s32.totalorder %s19, 3
      %p50 = por %p48, %p49
      %p51 = scmp.ne.s32.totalorder %s43, %s46
      %p52 = scmp.eq.s32.totalorder %s19, 0
      %p53 = por %p51, %p52
      %p54 = scmp.ne.s32.totalorder %s43, %s46
      %p55 = scmp.eq.s32.totalorder %s24, 3
      %p56 = por %p54, %p55
      %p57 = scmp.ne.s32.totalorder %s46, %s47
      %p58 = scmp.eq.s32.totalorder %s24, 0
      %p59 = por %p57, %p58
      %p60 = scmp.ne.s32.totalorder %s46, %s47
      %p61 = scmp.eq.s32.totalorder %s25, 3
      %p62 = por %p60, %p61
      %p64 = scmp.ne.s32.totalorder %s47, %s63
      %p65 = scmp.eq.s32.totalorder %s25, 0
      %p66 = por %p64, %p65
      %s68 = sadd.s32 %s67, 1
      %p71 = scmp.eq.s32.totalorder %s19, 3
      %p72 = scmp.ne.s32.totalorder %s67, %s69
      %p73 = scmp.eq.s32.totalorder %s19, 0
      %p74 = por %p72, %p73
      %p75 = scmp.ne.s32.totalorder %s67, %s69
      %p76 = scmp.eq.s32.totalorder %s24, 3
      %p77 = por %p75, %p76
      %p78 = scmp.ne.s32.totalorder %s69, %s70
      %p79 = scmp.eq.s32.totalorder %s24, 0
      %p80 = por %p78, %p79
      %p81 = scmp.ne.s32.totalorder %s69, %s70
      %p82 = scmp.eq.s32.totalorder %s25, 3
      %p83 = por %p81, %p82
      %p85 = scmp.ne.s32.totalorder %s70, %s84
      %p86 = scmp.eq.s32.totalorder %s25, 0
      %p87 = por %p85, %p86
      %s89 = sadd.s32 %s88, 1
      %p92 = scmp.eq.s32.totalorder %s19, 3
      %p93 = scmp.ne.s32.totalorder %s88, %s90
      %p94 = scmp.eq.s32.totalorder %s19, 0
      %p95 = por %p93, %p94
      %p96 = scmp.ne.s32.totalorder %s88, %s90
      %p97 = scmp.eq.s32.totalorder %s24, 3
      %p98 = por %p96, %p97
      %p99 = scmp.ne.s32.totalorder %s90, %s91
      %p100 = scmp.eq.s32.totalorder %s24, 0
      %p101 = por %p99, %p100
      %p102 = scmp.ne.s32.totalorder %s90, %s91
      %p103 = scmp.eq.s32.totalorder %s25, 3
      %p104 = por %p102, %p103
      %p106 = scmp.ne.s32.totalorder %s91, %s105
      %p107 = scmp.eq.s32.totalorder %s25, 0
      %p108 = por %p106, %p107
      %s110 = sadd.s32 %s109, 1
      %p113 = scmp.eq.s32.totalorder %s19, 3
      %p114 = scmp.ne.s32.totalorder %s109, %s111
      %p115 = scmp.eq.s32.totalorder %s19, 0
      %p116 = por %p114, %p115
      %p117 = scmp.ne.s32.totalorder %s109, %s111
      %p118 = scmp.eq.s32.totalorder %s24, 3
      %p119 = por %p117, %p118
      %p120 = scmp.ne.s32.totalorder %s111, %s112
      %p121 = scmp.eq.s32.totalorder %s24, 0
      %p122 = por %p120, %p121
      %p123 = scmp.ne.s32.totalorder %s111, %s112
      %p124 = scmp.eq.s32.totalorder %s25, 3
      %p125 = por %p123, %p124
      %p127 = scmp.ne.s32.totalorder %s112, %s126
      %p128 = scmp.eq.s32.totalorder %s25, 0
      %p129 = por %p127, %p128
      %s131 = sadd.s32 %s130, 1
      %p134 = scmp.eq.s32.totalorder %s19, 3
      %p135 = scmp.ne.s32.totalorder %s130, %s132
      %p136 = scmp.eq.s32.totalorder %s19, 0
      %p137 = por %p135, %p136
      %p138 = scmp.ne.s32.totalorder %s130, %s132
      %p139 = scmp.eq.s32.totalorder %s24, 3
      %p140 = por %p138, %p139
      %p141 = scmp.ne.s32.totalorder %s132, %s133
      %p142 = scmp.eq.s32.totalorder %s24, 0
      %p143 = por %p141, %p142
      %p144 = scmp.ne.s32.totalorder %s132, %s133
      %p145 = scmp.eq.s32.totalorder %s25, 3
      %p146 = por %p144, %p145
      %p148 = scmp.ne.s32.totalorder %s133, %s147
      %p149 = scmp.eq.s32.totalorder %s25, 0
      %p150 = por %p148, %p149
      %s152 = sadd.s32 %s151, 1
      %p155 = scmp.eq.s32.totalorder %s19, 3
      %p156 = scmp.ne.s32.totalorder %s151, %s153
      %p157 = scmp.eq.s32.totalorder %s19, 0
      %p158 = por %p156, %p157
      %p159 = scmp.ne.s32.totalorder %s151, %s153
      %p160 = scmp.eq.s32.totalorder %s24, 3
      %p161 = por %p159, %p160
      %p162 = scmp.ne.s32.totalorder %s153, %s154
      %p163 = scmp.eq.s32.totalorder %s24, 0
      %p164 = por %p162, %p163
      %p165 = scmp.ne.s32.totalorder %s153, %s154
      %p166 = scmp.eq.s32.totalorder %s25, 3
      %p167 = por %p165, %p166
      %p169 = scmp.ne.s32.totalorder %s154, %s168
      %p170 = scmp.eq.s32.totalorder %s25, 0
      %p171 = por %p169, %p170
      %s172 = ssub.s32 %s26, %s38
      %p173 = scmp.eq.s32.totalorder %s172, 0
      %s175 = sadd.s32 %s174, 1
      %s176 = scalar_select %p173, %s174, %s175
      %p179 = pneg %p173
      %p180 = scmp.eq.s32.totalorder %s19, 3
      %p181 = por %p179, %p180
      %p182 = scmp.ne.s32.totalorder %s174, %s177
      %p183 = scmp.eq.s32.totalorder %s19, 0
      %p184 = por %p182, %p183
      %p185 = scmp.ne.s32.totalorder %s174, %s177
      %p186 = scmp.eq.s32.totalorder %s24, 3
      %p187 = por %p185, %p186
      %p188 = scmp.ne.s32.totalorder %s177, %s178
      %p189 = scmp.eq.s32.totalorder %s24, 0
      %p190 = por %p188, %p189
      %p191 = scmp.ne.s32.totalorder %s177, %s178
      %p192 = scmp.eq.s32.totalorder %s25, 3
      %p193 = por %p191, %p192
      %p195 = scmp.ne.s32.totalorder %s178, %s194
      %p196 = scmp.eq.s32.totalorder %s25, 0
      %p197 = por %p195, %p196
      %p198 = scmp.le.s32.totalorder 1, %s19
      %p199 = scmp.lt.s32.totalorder %s19, 5
      %p200 = pnand %p198, %p199
      %p201 = pneg %p200
      // Predicated region
      $region9: #{tpu_custom_call.1} parent=5 // pred_check
        _
      $region10: #{tpu_custom_call.1} parent=5 // pred_check_branch
        %203 = sbr.rel (%p200) target = $region12
      $region11: #{tpu_custom_call.1} parent=5 // pred_region
        %s204 = ssub.s32 %s19, 1
        // Predicated region
        $region13: #{tpu_custom_call.1} parent=11 // pred_check
          %p205 = pneg %p80
        $region14: #{tpu_custom_call.1} parent=11 // pred_check_branch
          %207 = sbr.rel (%p205) target = $region16
        $region15: #{tpu_custom_call.1} parent=11 // pred_region
          _
        $region16: #{tpu_custom_call.1} parent=11 // pred_fallthru
          _
        // Predicated region
        $region17: #{tpu_custom_call.1} parent=11 // pred_check
          %p208 = pneg %p101
        $region18: #{tpu_custom_call.1} parent=11 // pred_check_branch
          %210 = sbr.rel (%p208) target = $region20
        $region19: #{tpu_custom_call.1} parent=11 // pred_region
          %s212 = ssub.s32 2048, 2048
          %213 = vsyncadd [#allocation9], %s212
          %s214 = sshll.u32 [#allocation8], 4
          %s215 = int_to_ptr.vmem [resolvable:$true] %s214
          %220 = dma.hbm_to_vmem [thread:$0]  %s2, 2048, %s215, [#allocation9], 128, 128, 8
        $region20: #{tpu_custom_call.1} parent=11 // pred_fallthru
          _
        // Predicated region
        $region21: #{tpu_custom_call.1} parent=11 // pred_check
          %p221 = pneg %p122
        $region22: #{tpu_custom_call.1} parent=11 // pred_check_branch
          %223 = sbr.rel (%p221) target = $region24
        $region23: #{tpu_custom_call.1} parent=11 // pred_region
          _
        $region24: #{tpu_custom_call.1} parent=11 // pred_fallthru
          _
        // Predicated region
        $region25: #{tpu_custom_call.1} parent=11 // pred_check
          %p224 = pneg %p143
        $region26: #{tpu_custom_call.1} parent=11 // pred_check_branch
          %226 = sbr.rel (%p224) target = $region28
        $region27: #{tpu_custom_call.1} parent=11 // pred_region
          %s228 = ssub.s32 2048, 2048
          %229 = vsyncadd [#allocation9], %s228
          %s230 = sshll.u32 [#allocation10], 4
          %s231 = int_to_ptr.vmem [resolvable:$true] %s230
          %236 = dma.hbm_to_vmem [thread:$0]  %s4, 2048, %s231, [#allocation9], 128, 128, 8
        $region28: #{tpu_custom_call.1} parent=11 // pred_fallthru
          _
        // Predicated region
        $region29: #{tpu_custom_call.1} parent=11 // pred_check
          %p237 = pneg %p164
        $region30: #{tpu_custom_call.1} parent=11 // pred_check_branch
          %239 = sbr.rel (%p237) target = $region32
        $region31: #{tpu_custom_call.1} parent=11 // pred_region
          _
        $region32: #{tpu_custom_call.1} parent=11 // pred_fallthru
          _
      $region12: #{tpu_custom_call.1} parent=5 // pred_fallthru
        _
      %p240 = scmp.lt.s32.totalorder %s19, 4
      // Predicated region
      $region33: #{tpu_custom_call.1} parent=5 // pred_check
        %p241 = pneg %p240
      $region34: #{tpu_custom_call.1} parent=5 // pred_check_branch
        %243 = sbr.rel (%p241) target = $region36
      $region35: #{tpu_custom_call.1} parent=5 // pred_region
        // Predicated region
        $region37: #{tpu_custom_call.1} parent=35 // pred_check
          %p244 = pneg %p53
        $region38: #{tpu_custom_call.1} parent=35 // pred_check_branch
          %246 = sbr.rel (%p244) target = $region40
        $region39: #{tpu_custom_call.1} parent=35 // pred_region
          %s247 = sand.u32 %s43, 1
          %s248 = scalar_lea.sflag [#allocation6], %s247
          %s249 = sand.u32 %s43, 1
          %s250 = smul.addr %s249, 64
          %s251 = scalar_lea.vmem [#allocation5], %s250
          %s252 = smul.u32 8, %s26
          %s254 = ssub.s32 1024, 1024
          %255 = vsyncadd %s248, %s254
          %s256 = smul.addr %s252, 2
          %s257 = sadd.s32 %s27, %s256
          %s258 = smul.addr %s257, 128
          %s259 = scalar_lea.hbm %s0, %s258
          %s260 = sshll.u32 %s251, 4
          %s261 = int_to_ptr.vmem [resolvable:$true] %s260
          %266 = dma.hbm_to_vmem [thread:$0]  %s259, 1024, %s261, %s248, 256, 128, 8
        $region40: #{tpu_custom_call.1} parent=35 // pred_fallthru
          _
      $region36: #{tpu_custom_call.1} parent=5 // pred_fallthru
        _
      %p267 = scmp.le.s32.totalorder 1, %s19
      %p268 = scmp.lt.s32.totalorder %s19, 5
      %p269 = pnand %p267, %p268
      %p270 = pneg %p269
      // Predicated region
      $region41: #{tpu_custom_call.1} parent=5 // pred_check
        _
      $region42: #{tpu_custom_call.1} parent=5 // pred_check_branch
        %272 = sbr.rel (%p269) target = $region44
      $region43: #{tpu_custom_call.1} parent=5 // pred_region
        %s273 = ssub.s32 %s19, 1
        %s274 = sand.u32 %s46, 1
        %s275 = scalar_lea.sflag [#allocation6], %s274
        %s276 = sand.u32 %s46, 1
        %s277 = smul.addr %s276, 64
        %s278 = scalar_lea.vmem [#allocation5], %s277
        // Predicated region
        $region45: #{tpu_custom_call.1} parent=43 // pred_check
          %p279 = pneg %p59
        $region46: #{tpu_custom_call.1} parent=43 // pred_check_branch
          %281 = sbr.rel (%p279) target = $region48
        $region47: #{tpu_custom_call.1} parent=43 // pred_region
          %282 = dma.done %s275, 1024
        $region48: #{tpu_custom_call.1} parent=43 // pred_fallthru
          _
        // Predicated region
        $region49: #{tpu_custom_call.1} parent=43 // pred_check
          %p283 = pneg %p101
        $region50: #{tpu_custom_call.1} parent=43 // pred_check_branch
          %285 = sbr.rel (%p283) target = $region52
        $region51: #{tpu_custom_call.1} parent=43 // pred_region
          %286 = dma.done [#allocation9], 2048
        $region52: #{tpu_custom_call.1} parent=43 // pred_fallthru
          _
        // Predicated region
        $region53: #{tpu_custom_call.1} parent=43 // pred_check
          %p287 = pneg %p143
        $region54: #{tpu_custom_call.1} parent=43 // pred_check_branch
          %289 = sbr.rel (%p287) target = $region56
        $region55: #{tpu_custom_call.1} parent=43 // pred_region
          %290 = dma.done [#allocation9], 2048
        $region56: #{tpu_custom_call.1} parent=43 // pred_fallthru
          _
        %s291 = sand.u32 %s46, 1
        %s292 = scalar_lea.sflag [#allocation6], %s291
        %s293 = sand.u32 %s46, 1
        %s294 = smul.addr %s293, 64
        %s295 = scalar_lea.vmem [#allocation5], %s294
        %p296 = pneg %p59
        %p297 = pneg %p56
        %p298 = pneg %p80
        %p299 = pneg %p77
        %p300 = pneg %p101
        %p301 = pneg %p98
        %p302 = pneg %p122
        %p303 = pneg %p119
        %p304 = pneg %p143
        %p305 = pneg %p140
        %p306 = pneg %p164
        %p307 = pneg %p161
        %p308 = pneg %p190
        %p309 = pneg %p187
        %s310 = sand.u32 %s177, 1
        %s311 = scalar_lea.sflag [#allocation7], %s310
        %s312 = sand.u32 %s177, 1
        %s313 = smul.addr %s312, 8
        %s314 = scalar_lea.vmem [#allocation11], %s313
        %s315 = smul.u32 8, %s28
        %p316 = scmp.eq.s32.totalorder %s29, 0
        // Predicated region
        $region57: #{tpu_custom_call.1} parent=43 // pred_check
          %p317 = pneg %p316
        $region58: #{tpu_custom_call.1} parent=43 // pred_check_branch
          %319 = sbr.rel (%p317) target = $region60
        $region59: #{tpu_custom_call.1} parent=43 // pred_region
          %vm320 = vcmask 0
          %321 = vst.msk [vmem:[#allocation2] sm:$0x1] %vm320, -inf
          %322 = vst.msk [vmem:[#allocation2 + $0x1] sm:$0x1] %vm320, -inf
          %323 = vst.msk [vmem:[#allocation2 + $0x2] sm:$0x1] %vm320, -inf
          %324 = vst.msk [vmem:[#allocation2 + $0x3] sm:$0x1] %vm320, -inf
          %325 = vst.msk [vmem:[#allocation2 + $0x4] sm:$0x1] %vm320, -inf
          %326 = vst.msk [vmem:[#allocation2 + $0x5] sm:$0x1] %vm320, -inf
          %327 = vst.msk [vmem:[#allocation2 + $0x6] sm:$0x1] %vm320, -inf
          %328 = vst.msk [vmem:[#allocation2 + $0x7] sm:$0x1] %vm320, -inf
          %329 = vst.msk [vmem:[#allocation3] sm:$0x1] %vm320, 0.0
          %330 = vst.msk [vmem:[#allocation3 + $0x1] sm:$0x1] %vm320, 0.0
          %331 = vst.msk [vmem:[#allocation3 + $0x2] sm:$0x1] %vm320, 0.0
          %332 = vst.msk [vmem:[#allocation3 + $0x3] sm:$0x1] %vm320, 0.0
          %333 = vst.msk [vmem:[#allocation3 + $0x4] sm:$0x1] %vm320, 0.0
          %334 = vst.msk [vmem:[#allocation3 + $0x5] sm:$0x1] %vm320, 0.0
          %335 = vst.msk [vmem:[#allocation3 + $0x6] sm:$0x1] %vm320, 0.0
          %336 = vst.msk [vmem:[#allocation3 + $0x7] sm:$0x1] %vm320, 0.0
          %337 = vst [vmem:[#allocation4] sm:$0x1] 0.0
          %338 = vst [vmem:[#allocation4 + $0x1] sm:$0x1] 0.0
          %339 = vst [vmem:[#allocation4 + $0x2] sm:$0x1] 0.0
          %340 = vst [vmem:[#allocation4 + $0x3] sm:$0x1] 0.0
          %341 = vst [vmem:[#allocation4 + $0x4] sm:$0x1] 0.0
          %342 = vst [vmem:[#allocation4 + $0x5] sm:$0x1] 0.0
          %343 = vst [vmem:[#allocation4 + $0x6] sm:$0x1] 0.0
          %344 = vst [vmem:[#allocation4 + $0x7] sm:$0x1] 0.0
        $region60: #{tpu_custom_call.1} parent=43 // pred_fallthru
          _
        %v345 = vld [vmem:[%s278] sm:$0xff]
        %v346 = vld [vmem:[%s278 + $0x8] sm:$0xff]
        %v347 = vld [vmem:[%s278 + $0x10] sm:$0xff]
        %v348 = vld [vmem:[%s278 + $0x18] sm:$0xff]
        %v349 = vld [vmem:[%s278 + $0x20] sm:$0xff]
        %v350 = vld [vmem:[%s278 + $0x28] sm:$0xff]
        %v351 = vld [vmem:[%s278 + $0x30] sm:$0xff]
        %v352 = vld [vmem:[%s278 + $0x38] sm:$0xff]
        %v353 = vld [vmem:[%s1] sm:$0x1]
        %354 = vmatprep.subr.mxu0 0.0
        %355 = vmatpush1.xpose.msra.mxu0 %v345
        %356 = vmatprep.subr.mxu0 0.0
        %357 = vmatpush1.xpose.msra.mxu0 0.0
        %358 = vmatprep.subr.mxu0 0.0
        %359 = vmatpush1.xpose.msra.mxu0 0.0
        %360 = vmatprep.subr.mxu0 0.0
        %361 = vmatpush1.xpose.msra.mxu0 0.0
        %362 = vmatprep.subr.mxu0 0.0
        %363 = vmatpush1.xpose.msra.mxu0 0.0
        %364 = vmatprep.subr.mxu0 0.0
        %365 = vmatpush1.xpose.msra.mxu0 0.0
        %366 = vmatprep.subr.mxu0 0.0
        %367 = vmatpush1.xpose.msra.mxu0 0.0
        %368 = vmatprep.subr.mxu0 0.0
        %369 = vmatpush1.xpose.msra.mxu0 0.0
        %370 = vmatprep.subr.mxu0 0.0
        %371 = vmatpush1.xpose.msra.mxu0 0.0
        %372 = vmatprep.subr.mxu0 0.0
        %373 = vmatpush1.xpose.msra.mxu0 0.0
        %374 = vmatprep.subr.mxu0 0.0
        %375 = vmatpush1.xpose.msra.mxu0 0.0
        %376 = vmatprep.subr.mxu0 0.0
        %377 = vmatpush1.xpose.msra.mxu0 0.0
        %378 = vmatprep.subr.mxu0 0.0
        %379 = vmatpush1.xpose.msra.mxu0 0.0
        %380 = vmatprep.subr.mxu0 0.0
        %381 = vmatpush1.xpose.msra.mxu0 0.0
        %382 = vmatprep.subr.mxu0 0.0
        %383 = vmatpush1.xpose.msra.mxu0 0.0
        %384 = vmatprep.subr.mxu0 0.0
        %385 = vmatpush1.xpose.msra.mxu0 0.0
        %386 = vmatprep.subr.mxu0 0.0
        %387 = vmatpush1.xpose.msra.mxu0 0.0
        %388 = vmatprep.subr.mxu0 0.0
        %389 = vmatpush1.xpose.msra.mxu0 0.0
        %390 = vmatprep.subr.mxu0 0.0
        %391 = vmatpush1.xpose.msra.mxu0 0.0
        %392 = vmatprep.subr.mxu0 0.0
        %393 = vmatpush1.xpose.msra.mxu0 0.0
        %394 = vmatprep.subr.mxu0 0.0
        %395 = vmatpush1.xpose.msra.mxu0 0.0
        %396 = vmatprep.subr.mxu0 0.0
        %397 = vmatpush1.xpose.msra.mxu0 0.0
        %398 = vmatprep.subr.mxu0 0.0
        %399 = vmatpush1.xpose.msra.mxu0 0.0
        %400 = vmatprep.subr.mxu0 0.0
        %401 = vmatpush1.xpose.msra.mxu0 0.0
        %402 = vmatprep.subr.mxu0 0.0
        %403 = vmatpush1.xpose.msra.mxu0 0.0
        %404 = vmatprep.subr.mxu0 0.0
        %405 = vmatpush1.xpose.msra.mxu0 0.0
        %406 = vmatprep.subr.mxu0 0.0
        %407 = vmatpush1.xpose.msra.mxu0 0.0
        %408 = vmatprep.subr.mxu0 0.0
        %409 = vmatpush1.xpose.msra.mxu0 0.0
        %410 = vmatprep.subr.mxu0 0.0
        %411 = vmatpush1.xpose.msra.mxu0 0.0
        %412 = vmatprep.subr.mxu0 0.0
        %413 = vmatpush1.xpose.msra.mxu0 0.0
        %414 = vmatprep.subr.mxu0 0.0
        %415 = vmatpush1.xpose.msra.mxu0 0.0
        %416 = vmatprep.subr.mxu0 0.0
        %417 = vmatpush1.xpose.msra.mxu0 0.0
        %418 = vmatprep.mubr.f32.mxu0 0.0
        %419 = vmatmul.mubr.f32.gmra.mrb[0].mxu0 %v353
        %v420 = vpop.f32.mrb[0].mxu0
        %v421 = vadd.f32 0.0, %v420
        %v422 = vpop.f32.mrb[0].mxu0
        %423 = vdwg.mxu0
        %424 = vmatprep.subr.mxu0 0.0
        %425 = vmatpush1.xpose.msra.mxu0 %v346
        %426 = vmatprep.subr.mxu0 0.0
        %427 = vmatpush1.xpose.msra.mxu0 0.0
        %428 = vmatprep.subr.mxu0 0.0
        %429 = vmatpush1.xpose.msra.mxu0 0.0
        %430 = vmatprep.subr.mxu0 0.0
        %431 = vmatpush1.xpose.msra.mxu0 0.0
        %432 = vmatprep.subr.mxu0 0.0
        %433 = vmatpush1.xpose.msra.mxu0 0.0
        %434 = vmatprep.subr.mxu0 0.0
        %435 = vmatpush1.xpose.msra.mxu0 0.0
        %436 = vmatprep.subr.mxu0 0.0
        %437 = vmatpush1.xpose.msra.mxu0 0.0
        %438 = vmatprep.subr.mxu0 0.0
        %439 = vmatpush1.xpose.msra.mxu0 0.0
        %440 = vmatprep.subr.mxu0 0.0
        %441 = vmatpush1.xpose.msra.mxu0 0.0
        %442 = vmatprep.subr.mxu0 0.0
        %443 = vmatpush1.xpose.msra.mxu0 0.0
        %444 = vmatprep.subr.mxu0 0.0
        %445 = vmatpush1.xpose.msra.mxu0 0.0
        %446 = vmatprep.subr.mxu0 0.0
        %447 = vmatpush1.xpose.msra.mxu0 0.0
        %448 = vmatprep.subr.mxu0 0.0
        %449 = vmatpush1.xpose.msra.mxu0 0.0
        %450 = vmatprep.subr.mxu0 0.0
        %451 = vmatpush1.xpose.msra.mxu0 0.0
        %452 = vmatprep.subr.mxu0 0.0
        %453 = vmatpush1.xpose.msra.mxu0 0.0
        %454 = vmatprep.subr.mxu0 0.0
        %455 = vmatpush1.xpose.msra.mxu0 0.0
        %456 = vmatprep.subr.mxu0 0.0
        %457 = vmatpush1.xpose.msra.mxu0 0.0
        %458 = vmatprep.subr.mxu0 0.0
        %459 = vmatpush1.xpose.msra.mxu0 0.0
        %460 = vmatprep.subr.mxu0 0.0
        %461 = vmatpush1.xpose.msra.mxu0 0.0
        %462 = vmatprep.subr.mxu0 0.0
        %463 = vmatpush1.xpose.msra.mxu0 0.0
        %464 = vmatprep.subr.mxu0 0.0
        %465 = vmatpush1.xpose.msra.mxu0 0.0
        %466 = vmatprep.subr.mxu0 0.0
        %467 = vmatpush1.xpose.msra.mxu0 0.0
        %468 = vmatprep.subr.mxu0 0.0
        %469 = vmatpush1.xpose.msra.mxu0 0.0
        %470 = vmatprep.subr.mxu0 0.0
        %471 = vmatpush1.xpose.msra.mxu0 0.0
        %472 = vmatprep.subr.mxu0 0.0
        %473 = vmatpush1.xpose.msra.mxu0 0.0
        %474 = vmatprep.subr.mxu0 0.0
        %475 = vmatpush1.xpose.msra.mxu0 0.0
        %476 = vmatprep.subr.mxu0 0.0
        %477 = vmatpush1.xpose.msra.mxu0 0.0
        %478 = vmatprep.subr.mxu0 0.0
        %479 = vmatpush1.xpose.msra.mxu0 0.0
        %480 = vmatprep.subr.mxu0 0.0
        %481 = vmatpush1.xpose.msra.mxu0 0.0
        %482 = vmatprep.subr.mxu0 0.0
        %483 = vmatpush1.xpose.msra.mxu0 0.0
        %484 = vmatprep.subr.mxu0 0.0
        %485 = vmatpush1.xpose.msra.mxu0 0.0
        %486 = vmatprep.subr.mxu0 0.0
        %487 = vmatpush1.xpose.msra.mxu0 0.0
        %488 = vmatprep.mubr.f32.mxu0 0.0
        %489 = vmatmul.mubr.f32.gmra.mrb[0].mxu0 %v353
        %v490 = vpop.f32.mrb[0].mxu0
        %v491 = vadd.f32 0.0, %v490
        %v492 = vpop.f32.mrb[0].mxu0
        %493 = vdwg.mxu0
        %494 = vmatprep.subr.mxu0 0.0
        %495 = vmatpush1.xpose.msra.mxu0 %v347
        %496 = vmatprep.subr.mxu0 0.0
        %497 = vmatpush1.xpose.msra.mxu0 0.0
        %498 = vmatprep.subr.mxu0 0.0
        %499 = vmatpush1.xpose.msra.mxu0 0.0
        %500 = vmatprep.subr.mxu0 0.0
        %501 = vmatpush1.xpose.msra.mxu0 0.0
        %502 = vmatprep.subr.mxu0 0.0
        %503 = vmatpush1.xpose.msra.mxu0 0.0
        %504 = vmatprep.subr.mxu0 0.0
        %505 = vmatpush1.xpose.msra.mxu0 0.0
        %506 = vmatprep.subr.mxu0 0.0
        %507 = vmatpush1.xpose.msra.mxu0 0.0
        %508 = vmatprep.subr.mxu0 0.0
        %509 = vmatpush1.xpose.msra.mxu0 0.0
        %510 = vmatprep.subr.mxu0 0.0
        %511 = vmatpush1.xpose.msra.mxu0 0.0
        %512 = vmatprep.subr.mxu0 0.0
        %513 = vmatpush1.xpose.msra.mxu0 0.0
        %514 = vmatprep.subr.mxu0 0.0
        %515 = vmatpush1.xpose.msra.mxu0 0.0
        %516 = vmatprep.subr.mxu0 0.0
        %517 = vmatpush1.xpose.msra.mxu0 0.0
        %518 = vmatprep.subr.mxu0 0.0
        %519 = vmatpush1.xpose.msra.mxu0 0.0
        %520 = vmatprep.subr.mxu0 0.0
        %521 = vmatpush1.xpose.msra.mxu0 0.0
        %522 = vmatprep.subr.mxu0 0.0
        %523 = vmatpush1.xpose.msra.mxu0 0.0
        %524 = vmatprep.subr.mxu0 0.0
        %525 = vmatpush1.xpose.msra.mxu0 0.0
        %526 = vmatprep.subr.mxu0 0.0
        %527 = vmatpush1.xpose.msra.mxu0 0.0
        %528 = vmatprep.subr.mxu0 0.0
        %529 = vmatpush1.xpose.msra.mxu0 0.0
        %530 = vmatprep.subr.mxu0 0.0
        %531 = vmatpush1.xpose.msra.mxu0 0.0
        %532 = vmatprep.subr.mxu0 0.0
        %533 = vmatpush1.xpose.msra.mxu0 0.0
        %534 = vmatprep.subr.mxu0 0.0
        %535 = vmatpush1.xpose.msra.mxu0 0.0
        %536 = vmatprep.subr.mxu0 0.0
        %537 = vmatpush1.xpose.msra.mxu0 0.0
        %538 = vmatprep.subr.mxu0 0.0
        %539 = vmatpush1.xpose.msra.mxu0 0.0
        %540 = vmatprep.subr.mxu0 0.0
        %541 = vmatpush1.xpose.msra.mxu0 0.0
        %542 = vmatprep.subr.mxu0 0.0
        %543 = vmatpush1.xpose.msra.mxu0 0.0
        %544 = vmatprep.subr.mxu0 0.0
        %545 = vmatpush1.xpose.msra.mxu0 0.0
        %546 = vmatprep.subr.mxu0 0.0
        %547 = vmatpush1.xpose.msra.mxu0 0.0
        %548 = vmatprep.subr.mxu0 0.0
        %549 = vmatpush1.xpose.msra.mxu0 0.0
        %550 = vmatprep.subr.mxu0 0.0
        %551 = vmatpush1.xpose.msra.mxu0 0.0
        %552 = vmatprep.subr.mxu0 0.0
        %553 = vmatpush1.xpose.msra.mxu0 0.0
        %554 = vmatprep.subr.mxu0 0.0
        %555 = vmatpush1.xpose.msra.mxu0 0.0
        %556 = vmatprep.subr.mxu0 0.0
        %557 = vmatpush1.xpose.msra.mxu0 0.0
        %558 = vmatprep.mubr.f32.mxu0 0.0
        %559 = vmatmul.mubr.f32.gmra.mrb[0].mxu0 %v353
        %v560 = vpop.f32.mrb[0].mxu0
        %v561 = vadd.f32 0.0, %v560
        %v562 = vpop.f32.mrb[0].mxu0
        %563 = vdwg.mxu0
        %564 = vmatprep.subr.mxu0 0.0
        %565 = vmatpush1.xpose.msra.mxu0 %v348
        %566 = vmatprep.subr.mxu0 0.0
        %567 = vmatpush1.xpose.msra.mxu0 0.0
        %568 = vmatprep.subr.mxu0 0.0
        %569 = vmatpush1.xpose.msra.mxu0 0.0
        %570 = vmatprep.subr.mxu0 0.0
        %571 = vmatpush1.xpose.msra.mxu0 0.0
        %572 = vmatprep.subr.mxu0 0.0
        %573 = vmatpush1.xpose.msra.mxu0 0.0
        %574 = vmatprep.subr.mxu0 0.0
        %575 = vmatpush1.xpose.msra.mxu0 0.0
        %576 = vmatprep.subr.mxu0 0.0
        %577 = vmatpush1.xpose.msra.mxu0 0.0
        %578 = vmatprep.subr.mxu0 0.0
        %579 = vmatpush1.xpose.msra.mxu0 0.0
        %580 = vmatprep.subr.mxu0 0.0
        %581 = vmatpush1.xpose.msra.mxu0 0.0
        %582 = vmatprep.subr.mxu0 0.0
        %583 = vmatpush1.xpose.msra.mxu0 0.0
        %584 = vmatprep.subr.mxu0 0.0
        %585 = vmatpush1.xpose.msra.mxu0 0.0
        %586 = vmatprep.subr.mxu0 0.0
        %587 = vmatpush1.xpose.msra.mxu0 0.0
        %588 = vmatprep.subr.mxu0 0.0
        %589 = vmatpush1.xpose.msra.mxu0 0.0
        %590 = vmatprep.subr.mxu0 0.0
        %591 = vmatpush1.xpose.msra.mxu0 0.0
        %592 = vmatprep.subr.mxu0 0.0
        %593 = vmatpush1.xpose.msra.mxu0 0.0
        %594 = vmatprep.subr.mxu0 0.0
        %595 = vmatpush1.xpose.msra.mxu0 0.0
        %596 = vmatprep.subr.mxu0 0.0
        %597 = vmatpush1.xpose.msra.mxu0 0.0
        %598 = vmatprep.subr.mxu0 0.0
        %599 = vmatpush1.xpose.msra.mxu0 0.0
        %600 = vmatprep.subr.mxu0 0.0
        %601 = vmatpush1.xpose.msra.mxu0 0.0
        %602 = vmatprep.subr.mxu0 0.0
        %603 = vmatpush1.xpose.msra.mxu0 0.0
        %604 = vmatprep.subr.mxu0 0.0
        %605 = vmatpush1.xpose.msra.mxu0 0.0
        %606 = vmatprep.subr.mxu0 0.0
        %607 = vmatpush1.xpose.msra.mxu0 0.0
        %608 = vmatprep.subr.mxu0 0.0
        %609 = vmatpush1.xpose.msra.mxu0 0.0
        %610 = vmatprep.subr.mxu0 0.0
        %611 = vmatpush1.xpose.msra.mxu0 0.0
        %612 = vmatprep.subr.mxu0 0.0
        %613 = vmatpush1.xpose.msra.mxu0 0.0
        %614 = vmatprep.subr.mxu0 0.0
        %615 = vmatpush1.xpose.msra.mxu0 0.0
        %616 = vmatprep.subr.mxu0 0.0
        %617 = vmatpush1.xpose.msra.mxu0 0.0
        %618 = vmatprep.subr.mxu0 0.0
        %619 = vmatpush1.xpose.msra.mxu0 0.0
        %620 = vmatprep.subr.mxu0 0.0
        %621 = vmatpush1.xpose.msra.mxu0 0.0
        %622 = vmatprep.subr.mxu0 0.0
        %623 = vmatpush1.xpose.msra.mxu0 0.0
        %624 = vmatprep.subr.mxu0 0.0
        %625 = vmatpush1.xpose.msra.mxu0 0.0
        %626 = vmatprep.subr.mxu0 0.0
        %627 = vmatpush1.xpose.msra.mxu0 0.0
        %628 = vmatprep.mubr.f32.mxu0 0.0
        %629 = vmatmul.mubr.f32.gmra.mrb[0].mxu0 %v353
        %v630 = vpop.f32.mrb[0].mxu0
        %v631 = vadd.f32 0.0, %v630
        %v632 = vpop.f32.mrb[0].mxu0
        %633 = vdwg.mxu0
        %634 = vmatprep.subr.mxu0 0.0
        %635 = vmatpush1.xpose.msra.mxu0 %v349
        %636 = vmatprep.subr.mxu0 0.0
        %637 = vmatpush1.xpose.msra.mxu0 0.0
        %638 = vmatprep.subr.mxu0 0.0
        %639 = vmatpush1.xpose.msra.mxu0 0.0
        %640 = vmatprep.subr.mxu0 0.0
        %641 = vmatpush1.xpose.msra.mxu0 0.0
        %642 = vmatprep.subr.mxu0 0.0
        %643 = vmatpush1.xpose.msra.mxu0 0.0
        %644 = vmatprep.subr.mxu0 0.0
        %645 = vmatpush1.xpose.msra.mxu0 0.0
        %646 = vmatprep.subr.mxu0 0.0
        %647 = vmatpush1.xpose.msra.mxu0 0.0
        %648 = vmatprep.subr.mxu0 0.0
        %649 = vmatpush1.xpose.msra.mxu0 0.0
        %650 = vmatprep.subr.mxu0 0.0
        %651 = vmatpush1.xpose.msra.mxu0 0.0
        %652 = vmatprep.subr.mxu0 0.0
        %653 = vmatpush1.xpose.msra.mxu0 0.0
        %654 = vmatprep.subr.mxu0 0.0
        %655 = vmatpush1.xpose.msra.mxu0 0.0
        %656 = vmatprep.subr.mxu0 0.0
        %657 = vmatpush1.xpose.msra.mxu0 0.0
        %658 = vmatprep.subr.mxu0 0.0
        %659 = vmatpush1.xpose.msra.mxu0 0.0
        %660 = vmatprep.subr.mxu0 0.0
        %661 = vmatpush1.xpose.msra.mxu0 0.0
        %662 = vmatprep.subr.mxu0 0.0
        %663 = vmatpush1.xpose.msra.mxu0 0.0
        %664 = vmatprep.subr.mxu0 0.0
        %665 = vmatpush1.xpose.msra.mxu0 0.0
        %666 = vmatprep.subr.mxu0 0.0
        %667 = vmatpush1.xpose.msra.mxu0 0.0
        %668 = vmatprep.subr.mxu0 0.0
        %669 = vmatpush1.xpose.msra.mxu0 0.0
        %670 = vmatprep.subr.mxu0 0.0
        %671 = vmatpush1.xpose.msra.mxu0 0.0
        %672 = vmatprep.subr.mxu0 0.0
        %673 = vmatpush1.xpose.msra.mxu0 0.0
        %674 = vmatprep.subr.mxu0 0.0
        %675 = vmatpush1.xpose.msra.mxu0 0.0
        %676 = vmatprep.subr.mxu0 0.0
        %677 = vmatpush1.xpose.msra.mxu0 0.0
        %678 = vmatprep.subr.mxu0 0.0
        %679 = vmatpush1.xpose.msra.mxu0 0.0
        %680 = vmatprep.subr.mxu0 0.0
        %681 = vmatpush1.xpose.msra.mxu0 0.0
        %682 = vmatprep.subr.mxu0 0.0
        %683 = vmatpush1.xpose.msra.mxu0 0.0
        %684 = vmatprep.subr.mxu0 0.0
        %685 = vmatpush1.xpose.msra.mxu0 0.0
        %686 = vmatprep.subr.mxu0 0.0
        %687 = vmatpush1.xpose.msra.mxu0 0.0
        %688 = vmatprep.subr.mxu0 0.0
        %689 = vmatpush1.xpose.msra.mxu0 0.0
        %690 = vmatprep.subr.mxu0 0.0
        %691 = vmatpush1.xpose.msra.mxu0 0.0
        %692 = vmatprep.subr.mxu0 0.0
        %693 = vmatpush1.xpose.msra.mxu0 0.0
        %694 = vmatprep.subr.mxu0 0.0
        %695 = vmatpush1.xpose.msra.mxu0 0.0
        %696 = vmatprep.subr.mxu0 0.0
        %697 = vmatpush1.xpose.msra.mxu0 0.0
        %698 = vmatprep.mubr.f32.mxu0 0.0
        %699 = vmatmul.mubr.f32.gmra.mrb[0].mxu0 %v353
        %v700 = vpop.f32.mrb[0].mxu0
        %v701 = vadd.f32 0.0, %v700
        %v702 = vpop.f32.mrb[0].mxu0
        %703 = vdwg.mxu0
        %704 = vmatprep.subr.mxu0 0.0
        %705 = vmatpush1.xpose.msra.mxu0 %v350
        %706 = vmatprep.subr.mxu0 0.0
        %707 = vmatpush1.xpose.msra.mxu0 0.0
        %708 = vmatprep.subr.mxu0 0.0
        %709 = vmatpush1.xpose.msra.mxu0 0.0
        %710 = vmatprep.subr.mxu0 0.0
        %711 = vmatpush1.xpose.msra.mxu0 0.0
        %712 = vmatprep.subr.mxu0 0.0
        %713 = vmatpush1.xpose.msra.mxu0 0.0
        %714 = vmatprep.subr.mxu0 0.0
        %715 = vmatpush1.xpose.msra.mxu0 0.0
        %716 = vmatprep.subr.mxu0 0.0
        %717 = vmatpush1.xpose.msra.mxu0 0.0
        %718 = vmatprep.subr.mxu0 0.0
        %719 = vmatpush1.xpose.msra.mxu0 0.0
        %720 = vmatprep.subr.mxu0 0.0
        %721 = vmatpush1.xpose.msra.mxu0 0.0
        %722 = vmatprep.subr.mxu0 0.0
        %723 = vmatpush1.xpose.msra.mxu0 0.0
        %724 = vmatprep.subr.mxu0 0.0
        %725 = vmatpush1.xpose.msra.mxu0 0.0
        %726 = vmatprep.subr.mxu0 0.0
        %727 = vmatpush1.xpose.msra.mxu0 0.0
        %728 = vmatprep.subr.mxu0 0.0
        %729 = vmatpush1.xpose.msra.mxu0 0.0
        %730 = vmatprep.subr.mxu0 0.0
        %731 = vmatpush1.xpose.msra.mxu0 0.0
        %732 = vmatprep.subr.mxu0 0.0
        %733 = vmatpush1.xpose.msra.mxu0 0.0
        %734 = vmatprep.subr.mxu0 0.0
        %735 = vmatpush1.xpose.msra.mxu0 0.0
        %736 = vmatprep.subr.mxu0 0.0
        %737 = vmatpush1.xpose.msra.mxu0 0.0
        %738 = vmatprep.subr.mxu0 0.0
        %739 = vmatpush1.xpose.msra.mxu0 0.0
        %740 = vmatprep.subr.mxu0 0.0
        %741 = vmatpush1.xpose.msra.mxu0 0.0
        %742 = vmatprep.subr.mxu0 0.0
        %743 = vmatpush1.xpose.msra.mxu0 0.0
        %744 = vmatprep.subr.mxu0 0.0
        %745 = vmatpush1.xpose.msra.mxu0 0.0
        %746 = vmatprep.subr.mxu0 0.0
        %747 = vmatpush1.xpose.msra.mxu0 0.0
        %748 = vmatprep.subr.mxu0 0.0
        %749 = vmatpush1.xpose.msra.mxu0 0.0
        %750 = vmatprep.subr.mxu0 0.0
        %751 = vmatpush1.xpose.msra.mxu0 0.0
        %752 = vmatprep.subr.mxu0 0.0
        %753 = vmatpush1.xpose.msra.mxu0 0.0
        %754 = vmatprep.subr.mxu0 0.0
        %755 = vmatpush1.xpose.msra.mxu0 0.0
        %756 = vmatprep.subr.mxu0 0.0
        %757 = vmatpush1.xpose.msra.mxu0 0.0
        %758 = vmatprep.subr.mxu0 0.0
        %759 = vmatpush1.xpose.msra.mxu0 0.0
        %760 = vmatprep.subr.mxu0 0.0
        %761 = vmatpush1.xpose.msra.mxu0 0.0
        %762 = vmatprep.subr.mxu0 0.0
        %763 = vmatpush1.xpose.msra.mxu0 0.0
        %764 = vmatprep.subr.mxu0 0.0
        %765 = vmatpush1.xpose.msra.mxu0 0.0
        %766 = vmatprep.subr.mxu0 0.0
        %767 = vmatpush1.xpose.msra.mxu0 0.0
        %768 = vmatprep.mubr.f32.mxu0 0.0
        %769 = vmatmul.mubr.f32.gmra.mrb[0].mxu0 %v353
        %v770 = vpop.f32.mrb[0].mxu0
        %v771 = vadd.f32 0.0, %v770
        %v772 = vpop.f32.mrb[0].mxu0
        %773 = vdwg.mxu0
        %774 = vmatprep.subr.mxu0 0.0
        %775 = vmatpush1.xpose.msra.mxu0 %v351
        %776 = vmatprep.subr.mxu0 0.0
        %777 = vmatpush1.xpose.msra.mxu0 0.0
        %778 = vmatprep.subr.mxu0 0.0
        %779 = vmatpush1.xpose.msra.mxu0 0.0
        %780 = vmatprep.subr.mxu0 0.0
        %781 = vmatpush1.xpose.msra.mxu0 0.0
        %782 = vmatprep.subr.mxu0 0.0
        %783 = vmatpush1.xpose.msra.mxu0 0.0
        %784 = vmatprep.subr.mxu0 0.0
        %785 = vmatpush1.xpose.msra.mxu0 0.0
        %786 = vmatprep.subr.mxu0 0.0
        %787 = vmatpush1.xpose.msra.mxu0 0.0
        %788 = vmatprep.subr.mxu0 0.0
        %789 = vmatpush1.xpose.msra.mxu0 0.0
        %790 = vmatprep.subr.mxu0 0.0
        %791 = vmatpush1.xpose.msra.mxu0 0.0
        %792 = vmatprep.subr.mxu0 0.0
        %793 = vmatpush1.xpose.msra.mxu0 0.0
        %794 = vmatprep.subr.mxu0 0.0
        %795 = vmatpush1.xpose.msra.mxu0 0.0
        %796 = vmatprep.subr.mxu0 0.0
        %797 = vmatpush1.xpose.msra.mxu0 0.0
        %798 = vmatprep.subr.mxu0 0.0
        %799 = vmatpush1.xpose.msra.mxu0 0.0
        %800 = vmatprep.subr.mxu0 0.0
        %801 = vmatpush1.xpose.msra.mxu0 0.0
        %802 = vmatprep.subr.mxu0 0.0
        %803 = vmatpush1.xpose.msra.mxu0 0.0
        %804 = vmatprep.subr.mxu0 0.0
        %805 = vmatpush1.xpose.msra.mxu0 0.0
        %806 = vmatprep.subr.mxu0 0.0
        %807 = vmatpush1.xpose.msra.mxu0 0.0
        %808 = vmatprep.subr.mxu0 0.0
        %809 = vmatpush1.xpose.msra.mxu0 0.0
        %810 = vmatprep.subr.mxu0 0.0
        %811 = vmatpush1.xpose.msra.mxu0 0.0
        %812 = vmatprep.subr.mxu0 0.0
        %813 = vmatpush1.xpose.msra.mxu0 0.0
        %814 = vmatprep.subr.mxu0 0.0
        %815 = vmatpush1.xpose.msra.mxu0 0.0
        %816 = vmatprep.subr.mxu0 0.0
        %817 = vmatpush1.xpose.msra.mxu0 0.0
        %818 = vmatprep.subr.mxu0 0.0
        %819 = vmatpush1.xpose.msra.mxu0 0.0
        %820 = vmatprep.subr.mxu0 0.0
        %821 = vmatpush1.xpose.msra.mxu0 0.0
        %822 = vmatprep.subr.mxu0 0.0
        %823 = vmatpush1.xpose.msra.mxu0 0.0
        %824 = vmatprep.subr.mxu0 0.0
        %825 = vmatpush1.xpose.msra.mxu0 0.0
        %826 = vmatprep.subr.mxu0 0.0
        %827 = vmatpush1.xpose.msra.mxu0 0.0
        %828 = vmatprep.subr.mxu0 0.0
        %829 = vmatpush1.xpose.msra.mxu0 0.0
        %830 = vmatprep.subr.mxu0 0.0
        %831 = vmatpush1.xpose.msra.mxu0 0.0
        %832 = vmatprep.subr.mxu0 0.0
        %833 = vmatpush1.xpose.msra.mxu0 0.0
        %834 = vmatprep.subr.mxu0 0.0
        %835 = vmatpush1.xpose.msra.mxu0 0.0
        %836 = vmatprep.subr.mxu0 0.0
        %837 = vmatpush1.xpose.msra.mxu0 0.0
        %838 = vmatprep.mubr.f32.mxu0 0.0
        %839 = vmatmul.mubr.f32.gmra.mrb[0].mxu0 %v353
        %v840 = vpop.f32.mrb[0].mxu0
        %v841 = vadd.f32 0.0, %v840
        %v842 = vpop.f32.mrb[0].mxu0
        %843 = vdwg.mxu0
        %844 = vmatprep.subr.mxu0 0.0
        %845 = vmatpush1.xpose.msra.mxu0 %v352
        %846 = vmatprep.subr.mxu0 0.0
        %847 = vmatpush1.xpose.msra.mxu0 0.0
        %848 = vmatprep.subr.mxu0 0.0
        %849 = vmatpush1.xpose.msra.mxu0 0.0
        %850 = vmatprep.subr.mxu0 0.0
        %851 = vmatpush1.xpose.msra.mxu0 0.0
        %852 = vmatprep.subr.mxu0 0.0
        %853 = vmatpush1.xpose.msra.mxu0 0.0
        %854 = vmatprep.subr.mxu0 0.0
        %855 = vmatpush1.xpose.msra.mxu0 0.0
        %856 = vmatprep.subr.mxu0 0.0
        %857 = vmatpush1.xpose.msra.mxu0 0.0
        %858 = vmatprep.subr.mxu0 0.0
        %859 = vmatpush1.xpose.msra.mxu0 0.0
        %860 = vmatprep.subr.mxu0 0.0
        %861 = vmatpush1.xpose.msra.mxu0 0.0
        %862 = vmatprep.subr.mxu0 0.0
        %863 = vmatpush1.xpose.msra.mxu0 0.0
        %864 = vmatprep.subr.mxu0 0.0
        %865 = vmatpush1.xpose.msra.mxu0 0.0
        %866 = vmatprep.subr.mxu0 0.0
        %867 = vmatpush1.xpose.msra.mxu0 0.0
        %868 = vmatprep.subr.mxu0 0.0
        %869 = vmatpush1.xpose.msra.mxu0 0.0
        %870 = vmatprep.subr.mxu0 0.0
        %871 = vmatpush1.xpose.msra.mxu0 0.0
        %872 = vmatprep.subr.mxu0 0.0
        %873 = vmatpush1.xpose.msra.mxu0 0.0
        %874 = vmatprep.subr.mxu0 0.0
        %875 = vmatpush1.xpose.msra.mxu0 0.0
        %876 = vmatprep.subr.mxu0 0.0
        %877 = vmatpush1.xpose.msra.mxu0 0.0
        %878 = vmatprep.subr.mxu0 0.0
        %879 = vmatpush1.xpose.msra.mxu0 0.0
        %880 = vmatprep.subr.mxu0 0.0
        %881 = vmatpush1.xpose.msra.mxu0 0.0
        %882 = vmatprep.subr.mxu0 0.0
        %883 = vmatpush1.xpose.msra.mxu0 0.0
        %884 = vmatprep.subr.mxu0 0.0
        %885 = vmatpush1.xpose.msra.mxu0 0.0
        %886 = vmatprep.subr.mxu0 0.0
        %887 = vmatpush1.xpose.msra.mxu0 0.0
        %888 = vmatprep.subr.mxu0 0.0
        %889 = vmatpush1.xpose.msra.mxu0 0.0
        %890 = vmatprep.subr.mxu0 0.0
        %891 = vmatpush1.xpose.msra.mxu0 0.0
        %892 = vmatprep.subr.mxu0 0.0
        %893 = vmatpush1.xpose.msra.mxu0 0.0
        %894 = vmatprep.subr.mxu0 0.0
        %895 = vmatpush1.xpose.msra.mxu0 0.0
        %896 = vmatprep.subr.mxu0 0.0
        %897 = vmatpush1.xpose.msra.mxu0 0.0
        %898 = vmatprep.subr.mxu0 0.0
        %899 = vmatpush1.xpose.msra.mxu0 0.0
        %900 = vmatprep.subr.mxu0 0.0
        %901 = vmatpush1.xpose.msra.mxu0 0.0
        %902 = vmatprep.subr.mxu0 0.0
        %903 = vmatpush1.xpose.msra.mxu0 0.0
        %904 = vmatprep.subr.mxu0 0.0
        %905 = vmatpush1.xpose.msra.mxu0 0.0
        %906 = vmatprep.subr.mxu0 0.0
        %907 = vmatpush1.xpose.msra.mxu0 0.0
        %908 = vmatprep.mubr.f32.mxu0 0.0
        %909 = vmatmul.mubr.f32.gmra.mrb[0].mxu0 %v353
        %v910 = vpop.f32.mrb[0].mxu0
        %v911 = vadd.f32 0.0, %v910
        %v912 = vpop.f32.mrb[0].mxu0
        %913 = vdwg.mxu0
        %v914 = vld [vmem:[#allocation2] sm:$0x1]
        %v915 = vld [vmem:[#allocation2 + $0x1] sm:$0x1]
        %v916 = vld [vmem:[#allocation2 + $0x2] sm:$0x1]
        %v917 = vld [vmem:[#allocation2 + $0x3] sm:$0x1]
        %v918 = vld [vmem:[#allocation2 + $0x4] sm:$0x1]
        %v919 = vld [vmem:[#allocation2 + $0x5] sm:$0x1]
        %v920 = vld [vmem:[#allocation2 + $0x6] sm:$0x1]
        %v921 = vld [vmem:[#allocation2 + $0x7] sm:$0x1]
        %vm922 = vcmask 57344
        %v923 = vsel %vm922, %v421, -inf
        %924 = vmax.xlane.f32.xlu0 %v923
        %v925 = vpop.xlane.xlu0 %924
        %v926 = vsel %vm922, %v491, -inf
        %927 = vmax.xlane.f32.xlu0 %v926
        %v928 = vpop.xlane.xlu0 %927
        %v929 = vsel %vm922, %v561, -inf
        %930 = vmax.xlane.f32.xlu0 %v929
        %v931 = vpop.xlane.xlu0 %930
        %v932 = vsel %vm922, %v631, -inf
        %933 = vmax.xlane.f32.xlu0 %v932
        %v934 = vpop.xlane.xlu0 %933
        %v935 = vsel %vm922, %v701, -inf
        %936 = vmax.xlane.f32.xlu0 %v935
        %v937 = vpop.xlane.xlu0 %936
        %v938 = vsel %vm922, %v771, -inf
        %939 = vmax.xlane.f32.xlu0 %v938
        %v940 = vpop.xlane.xlu0 %939
        %v941 = vsel %vm922, %v841, -inf
        %942 = vmax.xlane.f32.xlu0 %v941
        %v943 = vpop.xlane.xlu0 %942
        %v944 = vsel %vm922, %v911, -inf
        %945 = vmax.xlane.f32.xlu0 %v944
        %v946 = vpop.xlane.xlu0 %945
        %v947 = vmax.f32 %v914, %v925
        %v948 = vmax.f32 %v915, %v928
        %v949 = vmax.f32 %v916, %v931
        %v950 = vmax.f32 %v917, %v934
        %v951 = vmax.f32 %v918, %v937
        %v952 = vmax.f32 %v919, %v940
        %v953 = vmax.f32 %v920, %v943
        %v954 = vmax.f32 %v921, %v946
        %v955 = vsub.f32 %v914, %v947
        %v956 = vsub.f32 %v915, %v948
        %v957 = vsub.f32 %v916, %v949
        %v958 = vsub.f32 %v917, %v950
        %v959 = vsub.f32 %v918, %v951
        %v960 = vsub.f32 %v919, %v952
        %v961 = vsub.f32 %v920, %v953
        %v962 = vsub.f32 %v921, %v954
        %v963 = vmul.f32 %v955, 1.442695
        %v964 = vpow.pop %v963
        %v965 = vmul.f32 %v956, 1.442695
        %v966 = vpow.pop %v965
        %v967 = vmul.f32 %v957, 1.442695
        %v968 = vpow.pop %v967
        %v969 = vmul.f32 %v958, 1.442695
        %v970 = vpow.pop %v969
        %v971 = vmul.f32 %v959, 1.442695
        %v972 = vpow.pop %v971
        %v973 = vmul.f32 %v960, 1.442695
        %v974 = vpow.pop %v973
        %v975 = vmul.f32 %v961, 1.442695
        %v976 = vpow.pop %v975
        %v977 = vmul.f32 %v962, 1.442695
        %v978 = vpow.pop %v977
        %980 = vset.pattern.permute.xlu0 0
        %981 = vperm.xlu0 %980, %v947
        %v982 = vpop.permute.xlu0 %981
        %v984 = vlaneseq
        %v985 = vshrl.u32 %v984, 7
        %v986 = vsub.s32 0, %v985
        %v987 = vrot.slane %v982, %v986
        %989 = vset.pattern.permute.xlu0 0
        %990 = vperm.xlu0 %989, %v948
        %v991 = vpop.permute.xlu0 %990
        %v993 = vlaneseq
        %v994 = vshrl.u32 %v993, 7
        %v995 = vsub.s32 0, %v994
        %v996 = vrot.slane %v991, %v995
        %998 = vset.pattern.permute.xlu0 0
        %999 = vperm.xlu0 %998, %v949
        %v1000 = vpop.permute.xlu0 %999
        %v1002 = vlaneseq
        %v1003 = vshrl.u32 %v1002, 7
        %v1004 = vsub.s32 0, %v1003
        %v1005 = vrot.slane %v1000, %v1004
        %1007 = vset.pattern.permute.xlu0 0
        %1008 = vperm.xlu0 %1007, %v950
        %v1009 = vpop.permute.xlu0 %1008
        %v1011 = vlaneseq
        %v1012 = vshrl.u32 %v1011, 7
        %v1013 = vsub.s32 0, %v1012
        %v1014 = vrot.slane %v1009, %v1013
        %1016 = vset.pattern.permute.xlu0 0
        %1017 = vperm.xlu0 %1016, %v951
        %v1018 = vpop.permute.xlu0 %1017
        %v1020 = vlaneseq
        %v1021 = vshrl.u32 %v1020, 7
        %v1022 = vsub.s32 0, %v1021
        %v1023 = vrot.slane %v1018, %v1022
        %1025 = vset.pattern.permute.xlu0 0
        %1026 = vperm.xlu0 %1025, %v952
        %v1027 = vpop.permute.xlu0 %1026
        %v1029 = vlaneseq
        %v1030 = vshrl.u32 %v1029, 7
        %v1031 = vsub.s32 0, %v1030
        %v1032 = vrot.slane %v1027, %v1031
        %1034 = vset.pattern.permute.xlu0 0
        %1035 = vperm.xlu0 %1034, %v953
        %v1036 = vpop.permute.xlu0 %1035
        %v1038 = vlaneseq
        %v1039 = vshrl.u32 %v1038, 7
        %v1040 = vsub.s32 0, %v1039
        %v1041 = vrot.slane %v1036, %v1040
        %1043 = vset.pattern.permute.xlu0 0
        %1044 = vperm.xlu0 %1043, %v954
        %v1045 = vpop.permute.xlu0 %1044
        %v1047 = vlaneseq
        %v1048 = vshrl.u32 %v1047, 7
        %v1049 = vsub.s32 0, %v1048
        %v1050 = vrot.slane %v1045, %v1049
        %v1051 = vsub.f32 %v421, %v987
        %v1052 = vsub.f32 %v491, %v996
        %v1053 = vsub.f32 %v561, %v1005
        %v1054 = vsub.f32 %v631, %v1014
        %v1055 = vsub.f32 %v701, %v1023
        %v1056 = vsub.f32 %v771, %v1032
        %v1057 = vsub.f32 %v841, %v1041
        %v1058 = vsub.f32 %v911, %v1050
        %v1059 = vmul.f32 %v1051, 1.442695
        %v1060 = vpow.pop %v1059
        %v1061 = vmul.f32 %v1052, 1.442695
        %v1062 = vpow.pop %v1061
        %v1063 = vmul.f32 %v1053, 1.442695
        %v1064 = vpow.pop %v1063
        %v1065 = vmul.f32 %v1054, 1.442695
        %v1066 = vpow.pop %v1065
        %v1067 = vmul.f32 %v1055, 1.442695
        %v1068 = vpow.pop %v1067
        %v1069 = vmul.f32 %v1056, 1.442695
        %v1070 = vpow.pop %v1069
        %v1071 = vmul.f32 %v1057, 1.442695
        %v1072 = vpow.pop %v1071
        %v1073 = vmul.f32 %v1058, 1.442695
        %v1074 = vpow.pop %v1073
        %v1075 = vld [vmem:[#allocation3] sm:$0x1]
        %v1076 = vld [vmem:[#allocation3 + $0x1] sm:$0x1]
        %v1077 = vld [vmem:[#allocation3 + $0x2] sm:$0x1]
        %v1078 = vld [vmem:[#allocation3 + $0x3] sm:$0x1]
        %v1079 = vld [vmem:[#allocation3 + $0x4] sm:$0x1]
        %v1080 = vld [vmem:[#allocation3 + $0x5] sm:$0x1]
        %v1081 = vld [vmem:[#allocation3 + $0x6] sm:$0x1]
        %v1082 = vld [vmem:[#allocation3 + $0x7] sm:$0x1]
        %v1083 = vmul.f32 %v964, %v1075
        %v1084 = vmul.f32 %v966, %v1076
        %v1085 = vmul.f32 %v968, %v1077
        %v1086 = vmul.f32 %v970, %v1078
        %v1087 = vmul.f32 %v972, %v1079
        %v1088 = vmul.f32 %v974, %v1080
        %v1089 = vmul.f32 %v976, %v1081
        %v1090 = vmul.f32 %v978, %v1082
        %v1091 = vsel %vm922, %v1060, 0.0
        %1092 = vadd.xlane.f32.xlu0 %v1091
        %v1093 = vpop.xlane.xlu0 %1092
        %v1094 = vsel %vm922, %v1062, 0.0
        %1095 = vadd.xlane.f32.xlu0 %v1094
        %v1096 = vpop.xlane.xlu0 %1095
        %v1097 = vsel %vm922, %v1064, 0.0
        %1098 = vadd.xlane.f32.xlu0 %v1097
        %v1099 = vpop.xlane.xlu0 %1098
        %v1100 = vsel %vm922, %v1066, 0.0
        %1101 = vadd.xlane.f32.xlu0 %v1100
        %v1102 = vpop.xlane.xlu0 %1101
        %v1103 = vsel %vm922, %v1068, 0.0
        %1104 = vadd.xlane.f32.xlu0 %v1103
        %v1105 = vpop.xlane.xlu0 %1104
        %v1106 = vsel %vm922, %v1070, 0.0
        %1107 = vadd.xlane.f32.xlu0 %v1106
        %v1108 = vpop.xlane.xlu0 %1107
        %v1109 = vsel %vm922, %v1072, 0.0
        %1110 = vadd.xlane.f32.xlu0 %v1109
        %v1111 = vpop.xlane.xlu0 %1110
        %v1112 = vsel %vm922, %v1074, 0.0
        %1113 = vadd.xlane.f32.xlu0 %v1112
        %v1114 = vpop.xlane.xlu0 %1113
        %v1115 = vadd.f32 %v1083, %v1093
        %v1116 = vadd.f32 %v1084, %v1096
        %v1117 = vadd.f32 %v1085, %v1099
        %v1118 = vadd.f32 %v1086, %v1102
        %v1119 = vadd.f32 %v1087, %v1105
        %v1120 = vadd.f32 %v1088, %v1108
        %v1121 = vadd.f32 %v1089, %v1111
        %v1122 = vadd.f32 %v1090, %v1114
        %vm1123 = vcmask 0
        %1124 = vst.msk [vmem:[#allocation3] sm:$0x1] %vm1123, %v1115
        %1125 = vst.msk [vmem:[#allocation3 + $0x1] sm:$0x1] %vm1123, %v1116
        %1126 = vst.msk [vmem:[#allocation3 + $0x2] sm:$0x1] %vm1123, %v1117
        %1127 = vst.msk [vmem:[#allocation3 + $0x3] sm:$0x1] %vm1123, %v1118
        %1128 = vst.msk [vmem:[#allocation3 + $0x4] sm:$0x1] %vm1123, %v1119
        %1129 = vst.msk [vmem:[#allocation3 + $0x5] sm:$0x1] %vm1123, %v1120
        %1130 = vst.msk [vmem:[#allocation3 + $0x6] sm:$0x1] %vm1123, %v1121
        %1131 = vst.msk [vmem:[#allocation3 + $0x7] sm:$0x1] %vm1123, %v1122
        %v1132 = vld [vmem:[#allocation4] sm:$0x1]
        %v1133 = vld [vmem:[#allocation4 + $0x1] sm:$0x1]
        %v1134 = vld [vmem:[#allocation4 + $0x2] sm:$0x1]
        %v1135 = vld [vmem:[#allocation4 + $0x3] sm:$0x1]
        %v1136 = vld [vmem:[#allocation4 + $0x4] sm:$0x1]
        %v1137 = vld [vmem:[#allocation4 + $0x5] sm:$0x1]
        %v1138 = vld [vmem:[#allocation4 + $0x6] sm:$0x1]
        %v1139 = vld [vmem:[#allocation4 + $0x7] sm:$0x1]
        %1141 = vset.pattern.permute.xlu0 0
        %1142 = vperm.xlu0 %1141, %v964
        %v1143 = vpop.permute.xlu0 %1142
        %v1145 = vlaneseq
        %v1146 = vshrl.u32 %v1145, 7
        %v1147 = vsub.s32 0, %v1146
        %v1148 = vrot.slane %v1143, %v1147
        %1150 = vset.pattern.permute.xlu0 0
        %1151 = vperm.xlu0 %1150, %v966
        %v1152 = vpop.permute.xlu0 %1151
        %v1154 = vlaneseq
        %v1155 = vshrl.u32 %v1154, 7
        %v1156 = vsub.s32 0, %v1155
        %v1157 = vrot.slane %v1152, %v1156
        %1159 = vset.pattern.permute.xlu0 0
        %1160 = vperm.xlu0 %1159, %v968
        %v1161 = vpop.permute.xlu0 %1160
        %v1163 = vlaneseq
        %v1164 = vshrl.u32 %v1163, 7
        %v1165 = vsub.s32 0, %v1164
        %v1166 = vrot.slane %v1161, %v1165
        %1168 = vset.pattern.permute.xlu0 0
        %1169 = vperm.xlu0 %1168, %v970
        %v1170 = vpop.permute.xlu0 %1169
        %v1172 = vlaneseq
        %v1173 = vshrl.u32 %v1172, 7
        %v1174 = vsub.s32 0, %v1173
        %v1175 = vrot.slane %v1170, %v1174
        %1177 = vset.pattern.permute.xlu0 0
        %1178 = vperm.xlu0 %1177, %v972
        %v1179 = vpop.permute.xlu0 %1178
        %v1181 = vlaneseq
        %v1182 = vshrl.u32 %v1181, 7
        %v1183 = vsub.s32 0, %v1182
        %v1184 = vrot.slane %v1179, %v1183
        %1186 = vset.pattern.permute.xlu0 0
        %1187 = vperm.xlu0 %1186, %v974
        %v1188 = vpop.permute.xlu0 %1187
        %v1190 = vlaneseq
        %v1191 = vshrl.u32 %v1190, 7
        %v1192 = vsub.s32 0, %v1191
        %v1193 = vrot.slane %v1188, %v1192
        %1195 = vset.pattern.permute.xlu0 0
        %1196 = vperm.xlu0 %1195, %v976
        %v1197 = vpop.permute.xlu0 %1196
        %v1199 = vlaneseq
        %v1200 = vshrl.u32 %v1199, 7
        %v1201 = vsub.s32 0, %v1200
        %v1202 = vrot.slane %v1197, %v1201
        %1204 = vset.pattern.permute.xlu0 0
        %1205 = vperm.xlu0 %1204, %v978
        %v1206 = vpop.permute.xlu0 %1205
        %v1208 = vlaneseq
        %v1209 = vshrl.u32 %v1208, 7
        %v1210 = vsub.s32 0, %v1209
        %v1211 = vrot.slane %v1206, %v1210
        %v1212 = vmul.f32 %v1148, %v1132
        %v1213 = vmul.f32 %v1157, %v1133
        %v1214 = vmul.f32 %v1166, %v1134
        %v1215 = vmul.f32 %v1175, %v1135
        %v1216 = vmul.f32 %v1184, %v1136
        %v1217 = vmul.f32 %v1193, %v1137
        %v1218 = vmul.f32 %v1202, %v1138
        %v1219 = vmul.f32 %v1211, %v1139
        %vm1220 = vcmask 64512
        %v1222 = vsel %vm1220, %v1060, 0
        %1224 = vmatprep.subr.mxu0 0.0
        %1225 = vmatpush1.msra.mxu0 %v345
        %1226 = vmatprep.subr.mxu0 0.0
        %1227 = vmatpush1.msra.mxu0 0.0
        %1228 = vmatprep.subr.mxu0 0.0
        %1229 = vmatpush1.msra.mxu0 0.0
        %1230 = vmatprep.subr.mxu0 0.0
        %1231 = vmatpush1.msra.mxu0 0.0
        %1232 = vmatprep.subr.mxu0 0.0
        %1233 = vmatpush1.msra.mxu0 0.0
        %1234 = vmatprep.subr.mxu0 0.0
        %1235 = vmatpush1.msra.mxu0 0.0
        %1236 = vmatprep.subr.mxu0 0.0
        %1237 = vmatpush1.msra.mxu0 0.0
        %1238 = vmatprep.subr.mxu0 0.0
        %1239 = vmatpush1.msra.mxu0 0.0
        %1240 = vmatprep.subr.mxu0 0.0
        %1241 = vmatpush1.msra.mxu0 0.0
        %1242 = vmatprep.subr.mxu0 0.0
        %1243 = vmatpush1.msra.mxu0 0.0
        %1244 = vmatprep.subr.mxu0 0.0
        %1245 = vmatpush1.msra.mxu0 0.0
        %1246 = vmatprep.subr.mxu0 0.0
        %1247 = vmatpush1.msra.mxu0 0.0
        %1248 = vmatprep.subr.mxu0 0.0
        %1249 = vmatpush1.msra.mxu0 0.0
        %1250 = vmatprep.subr.mxu0 0.0
        %1251 = vmatpush1.msra.mxu0 0.0
        %1252 = vmatprep.subr.mxu0 0.0
        %1253 = vmatpush1.msra.mxu0 0.0
        %1254 = vmatprep.subr.mxu0 0.0
        %1255 = vmatpush1.msra.mxu0 0.0
        %1256 = vmatprep.subr.mxu0 0.0
        %1257 = vmatpush1.msra.mxu0 0.0
        %1258 = vmatprep.subr.mxu0 0.0
        %1259 = vmatpush1.msra.mxu0 0.0
        %1260 = vmatprep.subr.mxu0 0.0
        %1261 = vmatpush1.msra.mxu0 0.0
        %1262 = vmatprep.subr.mxu0 0.0
        %1263 = vmatpush1.msra.mxu0 0.0
        %1264 = vmatprep.subr.mxu0 0.0
        %1265 = vmatpush1.msra.mxu0 0.0
        %1266 = vmatprep.subr.mxu0 0.0
        %1267 = vmatpush1.msra.mxu0 0.0
        %1268 = vmatprep.subr.mxu0 0.0
        %1269 = vmatpush1.msra.mxu0 0.0
        %1270 = vmatprep.subr.mxu0 0.0
        %1271 = vmatpush1.msra.mxu0 0.0
        %1272 = vmatprep.subr.mxu0 0.0
        %1273 = vmatpush1.msra.mxu0 0.0
        %1274 = vmatprep.subr.mxu0 0.0
        %1275 = vmatpush1.msra.mxu0 0.0
        %1276 = vmatprep.subr.mxu0 0.0
        %1277 = vmatpush1.msra.mxu0 0.0
        %1278 = vmatprep.subr.mxu0 0.0
        %1279 = vmatpush1.msra.mxu0 0.0
        %1280 = vmatprep.subr.mxu0 0.0
        %1281 = vmatpush1.msra.mxu0 0.0
        %1282 = vmatprep.subr.mxu0 0.0
        %1283 = vmatpush1.msra.mxu0 0.0
        %1284 = vmatprep.subr.mxu0 0.0
        %1285 = vmatpush1.msra.mxu0 0.0
        %1286 = vmatprep.subr.mxu0 0.0
        %1287 = vmatpush1.msra.mxu0 0.0
        %1288 = vmatprep.mubr.f32.mxu0 0.0
        %1289 = vmatmul.mubr.f32.gmra.mrb[0].mxu0 %v1222
        %v1290 = vpop.f32.mrb[0].mxu0
        %v1291 = vadd.f32 0.0, %v1290
        %v1292 = vpop.f32.mrb[0].mxu0
        %1293 = vdwg.mxu0
        %v1295 = vsel %vm1220, %v1062, 0
        %1297 = vmatprep.subr.mxu0 0.0
        %1298 = vmatpush1.msra.mxu0 %v346
        %1299 = vmatprep.subr.mxu0 0.0
        %1300 = vmatpush1.msra.mxu0 0.0
        %1301 = vmatprep.subr.mxu0 0.0
        %1302 = vmatpush1.msra.mxu0 0.0
        %1303 = vmatprep.subr.mxu0 0.0
        %1304 = vmatpush1.msra.mxu0 0.0
        %1305 = vmatprep.subr.mxu0 0.0
        %1306 = vmatpush1.msra.mxu0 0.0
        %1307 = vmatprep.subr.mxu0 0.0
        %1308 = vmatpush1.msra.mxu0 0.0
        %1309 = vmatprep.subr.mxu0 0.0
        %1310 = vmatpush1.msra.mxu0 0.0
        %1311 = vmatprep.subr.mxu0 0.0
        %1312 = vmatpush1.msra.mxu0 0.0
        %1313 = vmatprep.subr.mxu0 0.0
        %1314 = vmatpush1.msra.mxu0 0.0
        %1315 = vmatprep.subr.mxu0 0.0
        %1316 = vmatpush1.msra.mxu0 0.0
        %1317 = vmatprep.subr.mxu0 0.0
        %1318 = vmatpush1.msra.mxu0 0.0
        %1319 = vmatprep.subr.mxu0 0.0
        %1320 = vmatpush1.msra.mxu0 0.0
        %1321 = vmatprep.subr.mxu0 0.0
        %1322 = vmatpush1.msra.mxu0 0.0
        %1323 = vmatprep.subr.mxu0 0.0
        %1324 = vmatpush1.msra.mxu0 0.0
        %1325 = vmatprep.subr.mxu0 0.0
        %1326 = vmatpush1.msra.mxu0 0.0
        %1327 = vmatprep.subr.mxu0 0.0
        %1328 = vmatpush1.msra.mxu0 0.0
        %1329 = vmatprep.subr.mxu0 0.0
        %1330 = vmatpush1.msra.mxu0 0.0
        %1331 = vmatprep.subr.mxu0 0.0
        %1332 = vmatpush1.msra.mxu0 0.0
        %1333 = vmatprep.subr.mxu0 0.0
        %1334 = vmatpush1.msra.mxu0 0.0
        %1335 = vmatprep.subr.mxu0 0.0
        %1336 = vmatpush1.msra.mxu0 0.0
        %1337 = vmatprep.subr.mxu0 0.0
        %1338 = vmatpush1.msra.mxu0 0.0
        %1339 = vmatprep.subr.mxu0 0.0
        %1340 = vmatpush1.msra.mxu0 0.0
        %1341 = vmatprep.subr.mxu0 0.0
        %1342 = vmatpush1.msra.mxu0 0.0
        %1343 = vmatprep.subr.mxu0 0.0
        %1344 = vmatpush1.msra.mxu0 0.0
        %1345 = vmatprep.subr.mxu0 0.0
        %1346 = vmatpush1.msra.mxu0 0.0
        %1347 = vmatprep.subr.mxu0 0.0
        %1348 = vmatpush1.msra.mxu0 0.0
        %1349 = vmatprep.subr.mxu0 0.0
        %1350 = vmatpush1.msra.mxu0 0.0
        %1351 = vmatprep.subr.mxu0 0.0
        %1352 = vmatpush1.msra.mxu0 0.0
        %1353 = vmatprep.subr.mxu0 0.0
        %1354 = vmatpush1.msra.mxu0 0.0
        %1355 = vmatprep.subr.mxu0 0.0
        %1356 = vmatpush1.msra.mxu0 0.0
        %1357 = vmatprep.subr.mxu0 0.0
        %1358 = vmatpush1.msra.mxu0 0.0
        %1359 = vmatprep.subr.mxu0 0.0
        %1360 = vmatpush1.msra.mxu0 0.0
        %1361 = vmatprep.mubr.f32.mxu0 0.0
        %1362 = vmatmul.mubr.f32.gmra.mrb[0].mxu0 %v1295
        %v1363 = vpop.f32.mrb[0].mxu0
        %v1364 = vadd.f32 0.0, %v1363
        %v1365 = vpop.f32.mrb[0].mxu0
        %1366 = vdwg.mxu0
        %v1368 = vsel %vm1220, %v1064, 0
        %1370 = vmatprep.subr.mxu0 0.0
        %1371 = vmatpush1.msra.mxu0 %v347
        %1372 = vmatprep.subr.mxu0 0.0
        %1373 = vmatpush1.msra.mxu0 0.0
        %1374 = vmatprep.subr.mxu0 0.0
        %1375 = vmatpush1.msra.mxu0 0.0
        %1376 = vmatprep.subr.mxu0 0.0
        %1377 = vmatpush1.msra.mxu0 0.0
        %1378 = vmatprep.subr.mxu0 0.0
        %1379 = vmatpush1.msra.mxu0 0.0
        %1380 = vmatprep.subr.mxu0 0.0
        %1381 = vmatpush1.msra.mxu0 0.0
        %1382 = vmatprep.subr.mxu0 0.0
        %1383 = vmatpush1.msra.mxu0 0.0
        %1384 = vmatprep.subr.mxu0 0.0
        %1385 = vmatpush1.msra.mxu0 0.0
        %1386 = vmatprep.subr.mxu0 0.0
        %1387 = vmatpush1.msra.mxu0 0.0
        %1388 = vmatprep.subr.mxu0 0.0
        %1389 = vmatpush1.msra.mxu0 0.0
        %1390 = vmatprep.subr.mxu0 0.0
        %1391 = vmatpush1.msra.mxu0 0.0
        %1392 = vmatprep.subr.mxu0 0.0
        %1393 = vmatpush1.msra.mxu0 0.0
        %1394 = vmatprep.subr.mxu0 0.0
        %1395 = vmatpush1.msra.mxu0 0.0
        %1396 = vmatprep.subr.mxu0 0.0
        %1397 = vmatpush1.msra.mxu0 0.0
        %1398 = vmatprep.subr.mxu0 0.0
        %1399 = vmatpush1.msra.mxu0 0.0
        %1400 = vmatprep.subr.mxu0 0.0
        %1401 = vmatpush1.msra.mxu0 0.0
        %1402 = vmatprep.subr.mxu0 0.0
        %1403 = vmatpush1.msra.mxu0 0.0
        %1404 = vmatprep.subr.mxu0 0.0
        %1405 = vmatpush1.msra.mxu0 0.0
        %1406 = vmatprep.subr.mxu0 0.0
        %1407 = vmatpush1.msra.mxu0 0.0
        %1408 = vmatprep.subr.mxu0 0.0
        %1409 = vmatpush1.msra.mxu0 0.0
        %1410 = vmatprep.subr.mxu0 0.0
        %1411 = vmatpush1.msra.mxu0 0.0
        %1412 = vmatprep.subr.mxu0 0.0
        %1413 = vmatpush1.msra.mxu0 0.0
        %1414 = vmatprep.subr.mxu0 0.0
        %1415 = vmatpush1.msra.mxu0 0.0
        %1416 = vmatprep.subr.mxu0 0.0
        %1417 = vmatpush1.msra.mxu0 0.0
        %1418 = vmatprep.subr.mxu0 0.0
        %1419 = vmatpush1.msra.mxu0 0.0
        %1420 = vmatprep.subr.mxu0 0.0
        %1421 = vmatpush1.msra.mxu0 0.0
        %1422 = vmatprep.subr.mxu0 0.0
        %1423 = vmatpush1.msra.mxu0 0.0
        %1424 = vmatprep.subr.mxu0 0.0
        %1425 = vmatpush1.msra.mxu0 0.0
        %1426 = vmatprep.subr.mxu0 0.0
        %1427 = vmatpush1.msra.mxu0 0.0
        %1428 = vmatprep.subr.mxu0 0.0
        %1429 = vmatpush1.msra.mxu0 0.0
        %1430 = vmatprep.subr.mxu0 0.0
        %1431 = vmatpush1.msra.mxu0 0.0
        %1432 = vmatprep.subr.mxu0 0.0
        %1433 = vmatpush1.msra.mxu0 0.0
        %1434 = vmatprep.mubr.f32.mxu0 0.0
        %1435 = vmatmul.mubr.f32.gmra.mrb[0].mxu0 %v1368
        %v1436 = vpop.f32.mrb[0].mxu0
        %v1437 = vadd.f32 0.0, %v1436
        %v1438 = vpop.f32.mrb[0].mxu0
        %1439 = vdwg.mxu0
        %v1441 = vsel %vm1220, %v1066, 0
        %1443 = vmatprep.subr.mxu0 0.0
        %1444 = vmatpush1.msra.mxu0 %v348
        %1445 = vmatprep.subr.mxu0 0.0
        %1446 = vmatpush1.msra.mxu0 0.0
        %1447 = vmatprep.subr.mxu0 0.0
        %1448 = vmatpush1.msra.mxu0 0.0
        %1449 = vmatprep.subr.mxu0 0.0
        %1450 = vmatpush1.msra.mxu0 0.0
        %1451 = vmatprep.subr.mxu0 0.0
        %1452 = vmatpush1.msra.mxu0 0.0
        %1453 = vmatprep.subr.mxu0 0.0
        %1454 = vmatpush1.msra.mxu0 0.0
        %1455 = vmatprep.subr.mxu0 0.0
        %1456 = vmatpush1.msra.mxu0 0.0
        %1457 = vmatprep.subr.mxu0 0.0
        %1458 = vmatpush1.msra.mxu0 0.0
        %1459 = vmatprep.subr.mxu0 0.0
        %1460 = vmatpush1.msra.mxu0 0.0
        %1461 = vmatprep.subr.mxu0 0.0
        %1462 = vmatpush1.msra.mxu0 0.0
        %1463 = vmatprep.subr.mxu0 0.0
        %1464 = vmatpush1.msra.mxu0 0.0
        %1465 = vmatprep.subr.mxu0 0.0
        %1466 = vmatpush1.msra.mxu0 0.0
        %1467 = vmatprep.subr.mxu0 0.0
        %1468 = vmatpush1.msra.mxu0 0.0
        %1469 = vmatprep.subr.mxu0 0.0
        %1470 = vmatpush1.msra.mxu0 0.0
        %1471 = vmatprep.subr.mxu0 0.0
        %1472 = vmatpush1.msra.mxu0 0.0
        %1473 = vmatprep.subr.mxu0 0.0
        %1474 = vmatpush1.msra.mxu0 0.0
        %1475 = vmatprep.subr.mxu0 0.0
        %1476 = vmatpush1.msra.mxu0 0.0
        %1477 = vmatprep.subr.mxu0 0.0
        %1478 = vmatpush1.msra.mxu0 0.0
        %1479 = vmatprep.subr.mxu0 0.0
        %1480 = vmatpush1.msra.mxu0 0.0
        %1481 = vmatprep.subr.mxu0 0.0
        %1482 = vmatpush1.msra.mxu0 0.0
        %1483 = vmatprep.subr.mxu0 0.0
        %1484 = vmatpush1.msra.mxu0 0.0
        %1485 = vmatprep.subr.mxu0 0.0
        %1486 = vmatpush1.msra.mxu0 0.0
        %1487 = vmatprep.subr.mxu0 0.0
        %1488 = vmatpush1.msra.mxu0 0.0
        %1489 = vmatprep.subr.mxu0 0.0
        %1490 = vmatpush1.msra.mxu0 0.0
        %1491 = vmatprep.subr.mxu0 0.0
        %1492 = vmatpush1.msra.mxu0 0.0
        %1493 = vmatprep.subr.mxu0 0.0
        %1494 = vmatpush1.msra.mxu0 0.0
        %1495 = vmatprep.subr.mxu0 0.0
        %1496 = vmatpush1.msra.mxu0 0.0
        %1497 = vmatprep.subr.mxu0 0.0
        %1498 = vmatpush1.msra.mxu0 0.0
        %1499 = vmatprep.subr.mxu0 0.0
        %1500 = vmatpush1.msra.mxu0 0.0
        %1501 = vmatprep.subr.mxu0 0.0
        %1502 = vmatpush1.msra.mxu0 0.0
        %1503 = vmatprep.subr.mxu0 0.0
        %1504 = vmatpush1.msra.mxu0 0.0
        %1505 = vmatprep.subr.mxu0 0.0
        %1506 = vmatpush1.msra.mxu0 0.0
        %1507 = vmatprep.mubr.f32.mxu0 0.0
        %1508 = vmatmul.mubr.f32.gmra.mrb[0].mxu0 %v1441
        %v1509 = vpop.f32.mrb[0].mxu0
        %v1510 = vadd.f32 0.0, %v1509
        %v1511 = vpop.f32.mrb[0].mxu0
        %1512 = vdwg.mxu0
        %v1514 = vsel %vm1220, %v1068, 0
        %1516 = vmatprep.subr.mxu0 0.0
        %1517 = vmatpush1.msra.mxu0 %v349
        %1518 = vmatprep.subr.mxu0 0.0
        %1519 = vmatpush1.msra.mxu0 0.0
        %1520 = vmatprep.subr.mxu0 0.0
        %1521 = vmatpush1.msra.mxu0 0.0
        %1522 = vmatprep.subr.mxu0 0.0
        %1523 = vmatpush1.msra.mxu0 0.0
        %1524 = vmatprep.subr.mxu0 0.0
        %1525 = vmatpush1.msra.mxu0 0.0
        %1526 = vmatprep.subr.mxu0 0.0
        %1527 = vmatpush1.msra.mxu0 0.0
        %1528 = vmatprep.subr.mxu0 0.0
        %1529 = vmatpush1.msra.mxu0 0.0
        %1530 = vmatprep.subr.mxu0 0.0
        %1531 = vmatpush1.msra.mxu0 0.0
        %1532 = vmatprep.subr.mxu0 0.0
        %1533 = vmatpush1.msra.mxu0 0.0
        %1534 = vmatprep.subr.mxu0 0.0
        %1535 = vmatpush1.msra.mxu0 0.0
        %1536 = vmatprep.subr.mxu0 0.0
        %1537 = vmatpush1.msra.mxu0 0.0
        %1538 = vmatprep.subr.mxu0 0.0
        %1539 = vmatpush1.msra.mxu0 0.0
        %1540 = vmatprep.subr.mxu0 0.0
        %1541 = vmatpush1.msra.mxu0 0.0
        %1542 = vmatprep.subr.mxu0 0.0
        %1543 = vmatpush1.msra.mxu0 0.0
        %1544 = vmatprep.subr.mxu0 0.0
        %1545 = vmatpush1.msra.mxu0 0.0
        %1546 = vmatprep.subr.mxu0 0.0
        %1547 = vmatpush1.msra.mxu0 0.0
        %1548 = vmatprep.subr.mxu0 0.0
        %1549 = vmatpush1.msra.mxu0 0.0
        %1550 = vmatprep.subr.mxu0 0.0
        %1551 = vmatpush1.msra.mxu0 0.0
        %1552 = vmatprep.subr.mxu0 0.0
        %1553 = vmatpush1.msra.mxu0 0.0
        %1554 = vmatprep.subr.mxu0 0.0
        %1555 = vmatpush1.msra.mxu0 0.0
        %1556 = vmatprep.subr.mxu0 0.0
        %1557 = vmatpush1.msra.mxu0 0.0
        %1558 = vmatprep.subr.mxu0 0.0
        %1559 = vmatpush1.msra.mxu0 0.0
        %1560 = vmatprep.subr.mxu0 0.0
        %1561 = vmatpush1.msra.mxu0 0.0
        %1562 = vmatprep.subr.mxu0 0.0
        %1563 = vmatpush1.msra.mxu0 0.0
        %1564 = vmatprep.subr.mxu0 0.0
        %1565 = vmatpush1.msra.mxu0 0.0
        %1566 = vmatprep.subr.mxu0 0.0
        %1567 = vmatpush1.msra.mxu0 0.0
        %1568 = vmatprep.subr.mxu0 0.0
        %1569 = vmatpush1.msra.mxu0 0.0
        %1570 = vmatprep.subr.mxu0 0.0
        %1571 = vmatpush1.msra.mxu0 0.0
        %1572 = vmatprep.subr.mxu0 0.0
        %1573 = vmatpush1.msra.mxu0 0.0
        %1574 = vmatprep.subr.mxu0 0.0
        %1575 = vmatpush1.msra.mxu0 0.0
        %1576 = vmatprep.subr.mxu0 0.0
        %1577 = vmatpush1.msra.mxu0 0.0
        %1578 = vmatprep.subr.mxu0 0.0
        %1579 = vmatpush1.msra.mxu0 0.0
        %1580 = vmatprep.mubr.f32.mxu0 0.0
        %1581 = vmatmul.mubr.f32.gmra.mrb[0].mxu0 %v1514
        %v1582 = vpop.f32.mrb[0].mxu0
        %v1583 = vadd.f32 0.0, %v1582
        %v1584 = vpop.f32.mrb[0].mxu0
        %1585 = vdwg.mxu0
        %v1587 = vsel %vm1220, %v1070, 0
        %1589 = vmatprep.subr.mxu0 0.0
        %1590 = vmatpush1.msra.mxu0 %v350
        %1591 = vmatprep.subr.mxu0 0.0
        %1592 = vmatpush1.msra.mxu0 0.0
        %1593 = vmatprep.subr.mxu0 0.0
        %1594 = vmatpush1.msra.mxu0 0.0
        %1595 = vmatprep.subr.mxu0 0.0
        %1596 = vmatpush1.msra.mxu0 0.0
        %1597 = vmatprep.subr.mxu0 0.0
        %1598 = vmatpush1.msra.mxu0 0.0
        %1599 = vmatprep.subr.mxu0 0.0
        %1600 = vmatpush1.msra.mxu0 0.0
        %1601 = vmatprep.subr.mxu0 0.0
        %1602 = vmatpush1.msra.mxu0 0.0
        %1603 = vmatprep.subr.mxu0 0.0
        %1604 = vmatpush1.msra.mxu0 0.0
        %1605 = vmatprep.subr.mxu0 0.0
        %1606 = vmatpush1.msra.mxu0 0.0
        %1607 = vmatprep.subr.mxu0 0.0
        %1608 = vmatpush1.msra.mxu0 0.0
        %1609 = vmatprep.subr.mxu0 0.0
        %1610 = vmatpush1.msra.mxu0 0.0
        %1611 = vmatprep.subr.mxu0 0.0
        %1612 = vmatpush1.msra.mxu0 0.0
        %1613 = vmatprep.subr.mxu0 0.0
        %1614 = vmatpush1.msra.mxu0 0.0
        %1615 = vmatprep.subr.mxu0 0.0
        %1616 = vmatpush1.msra.mxu0 0.0
        %1617 = vmatprep.subr.mxu0 0.0
        %1618 = vmatpush1.msra.mxu0 0.0
        %1619 = vmatprep.subr.mxu0 0.0
        %1620 = vmatpush1.msra.mxu0 0.0
        %1621 = vmatprep.subr.mxu0 0.0
        %1622 = vmatpush1.msra.mxu0 0.0
        %1623 = vmatprep.subr.mxu0 0.0
        %1624 = vmatpush1.msra.mxu0 0.0
        %1625 = vmatprep.subr.mxu0 0.0
        %1626 = vmatpush1.msra.mxu0 0.0
        %1627 = vmatprep.subr.mxu0 0.0
        %1628 = vmatpush1.msra.mxu0 0.0
        %1629 = vmatprep.subr.mxu0 0.0
        %1630 = vmatpush1.msra.mxu0 0.0
        %1631 = vmatprep.subr.mxu0 0.0
        %1632 = vmatpush1.msra.mxu0 0.0
        %1633 = vmatprep.subr.mxu0 0.0
        %1634 = vmatpush1.msra.mxu0 0.0
        %1635 = vmatprep.subr.mxu0 0.0
        %1636 = vmatpush1.msra.mxu0 0.0
        %1637 = vmatprep.subr.mxu0 0.0
        %1638 = vmatpush1.msra.mxu0 0.0
        %1639 = vmatprep.subr.mxu0 0.0
        %1640 = vmatpush1.msra.mxu0 0.0
        %1641 = vmatprep.subr.mxu0 0.0
        %1642 = vmatpush1.msra.mxu0 0.0
        %1643 = vmatprep.subr.mxu0 0.0
        %1644 = vmatpush1.msra.mxu0 0.0
        %1645 = vmatprep.subr.mxu0 0.0
        %1646 = vmatpush1.msra.mxu0 0.0
        %1647 = vmatprep.subr.mxu0 0.0
        %1648 = vmatpush1.msra.mxu0 0.0
        %1649 = vmatprep.subr.mxu0 0.0
        %1650 = vmatpush1.msra.mxu0 0.0
        %1651 = vmatprep.subr.mxu0 0.0
        %1652 = vmatpush1.msra.mxu0 0.0
        %1653 = vmatprep.mubr.f32.mxu0 0.0
        %1654 = vmatmul.mubr.f32.gmra.mrb[0].mxu0 %v1587
        %v1655 = vpop.f32.mrb[0].mxu0
        %v1656 = vadd.f32 0.0, %v1655
        %v1657 = vpop.f32.mrb[0].mxu0
        %1658 = vdwg.mxu0
        %v1660 = vsel %vm1220, %v1072, 0
        %1662 = vmatprep.subr.mxu0 0.0
        %1663 = vmatpush1.msra.mxu0 %v351
        %1664 = vmatprep.subr.mxu0 0.0
        %1665 = vmatpush1.msra.mxu0 0.0
        %1666 = vmatprep.subr.mxu0 0.0
        %1667 = vmatpush1.msra.mxu0 0.0
        %1668 = vmatprep.subr.mxu0 0.0
        %1669 = vmatpush1.msra.mxu0 0.0
        %1670 = vmatprep.subr.mxu0 0.0
        %1671 = vmatpush1.msra.mxu0 0.0
        %1672 = vmatprep.subr.mxu0 0.0
        %1673 = vmatpush1.msra.mxu0 0.0
        %1674 = vmatprep.subr.mxu0 0.0
        %1675 = vmatpush1.msra.mxu0 0.0
        %1676 = vmatprep.subr.mxu0 0.0
        %1677 = vmatpush1.msra.mxu0 0.0
        %1678 = vmatprep.subr.mxu0 0.0
        %1679 = vmatpush1.msra.mxu0 0.0
        %1680 = vmatprep.subr.mxu0 0.0
        %1681 = vmatpush1.msra.mxu0 0.0
        %1682 = vmatprep.subr.mxu0 0.0
        %1683 = vmatpush1.msra.mxu0 0.0
        %1684 = vmatprep.subr.mxu0 0.0
        %1685 = vmatpush1.msra.mxu0 0.0
        %1686 = vmatprep.subr.mxu0 0.0
        %1687 = vmatpush1.msra.mxu0 0.0
        %1688 = vmatprep.subr.mxu0 0.0
        %1689 = vmatpush1.msra.mxu0 0.0
        %1690 = vmatprep.subr.mxu0 0.0
        %1691 = vmatpush1.msra.mxu0 0.0
        %1692 = vmatprep.subr.mxu0 0.0
        %1693 = vmatpush1.msra.mxu0 0.0
        %1694 = vmatprep.subr.mxu0 0.0
        %1695 = vmatpush1.msra.mxu0 0.0
        %1696 = vmatprep.subr.mxu0 0.0
        %1697 = vmatpush1.msra.mxu0 0.0
        %1698 = vmatprep.subr.mxu0 0.0
        %1699 = vmatpush1.msra.mxu0 0.0
        %1700 = vmatprep.subr.mxu0 0.0
        %1701 = vmatpush1.msra.mxu0 0.0
        %1702 = vmatprep.subr.mxu0 0.0
        %1703 = vmatpush1.msra.mxu0 0.0
        %1704 = vmatprep.subr.mxu0 0.0
        %1705 = vmatpush1.msra.mxu0 0.0
        %1706 = vmatprep.subr.mxu0 0.0
        %1707 = vmatpush1.msra.mxu0 0.0
        %1708 = vmatprep.subr.mxu0 0.0
        %1709 = vmatpush1.msra.mxu0 0.0
        %1710 = vmatprep.subr.mxu0 0.0
        %1711 = vmatpush1.msra.mxu0 0.0
        %1712 = vmatprep.subr.mxu0 0.0
        %1713 = vmatpush1.msra.mxu0 0.0
        %1714 = vmatprep.subr.mxu0 0.0
        %1715 = vmatpush1.msra.mxu0 0.0
        %1716 = vmatprep.subr.mxu0 0.0
        %1717 = vmatpush1.msra.mxu0 0.0
        %1718 = vmatprep.subr.mxu0 0.0
        %1719 = vmatpush1.msra.mxu0 0.0
        %1720 = vmatprep.subr.mxu0 0.0
        %1721 = vmatpush1.msra.mxu0 0.0
        %1722 = vmatprep.subr.mxu0 0.0
        %1723 = vmatpush1.msra.mxu0 0.0
        %1724 = vmatprep.subr.mxu0 0.0
        %1725 = vmatpush1.msra.mxu0 0.0
        %1726 = vmatprep.mubr.f32.mxu0 0.0
        %1727 = vmatmul.mubr.f32.gmra.mrb[0].mxu0 %v1660
        %v1728 = vpop.f32.mrb[0].mxu0
        %v1729 = vadd.f32 0.0, %v1728
        %v1730 = vpop.f32.mrb[0].mxu0
        %1731 = vdwg.mxu0
        %v1733 = vsel %vm1220, %v1074, 0
        %1735 = vmatprep.subr.mxu0 0.0
        %1736 = vmatpush1.msra.mxu0 %v352
        %1737 = vmatprep.subr.mxu0 0.0
        %1738 = vmatpush1.msra.mxu0 0.0
        %1739 = vmatprep.subr.mxu0 0.0
        %1740 = vmatpush1.msra.mxu0 0.0
        %1741 = vmatprep.subr.mxu0 0.0
        %1742 = vmatpush1.msra.mxu0 0.0
        %1743 = vmatprep.subr.mxu0 0.0
        %1744 = vmatpush1.msra.mxu0 0.0
        %1745 = vmatprep.subr.mxu0 0.0
        %1746 = vmatpush1.msra.mxu0 0.0
        %1747 = vmatprep.subr.mxu0 0.0
        %1748 = vmatpush1.msra.mxu0 0.0
        %1749 = vmatprep.subr.mxu0 0.0
        %1750 = vmatpush1.msra.mxu0 0.0
        %1751 = vmatprep.subr.mxu0 0.0
        %1752 = vmatpush1.msra.mxu0 0.0
        %1753 = vmatprep.subr.mxu0 0.0
        %1754 = vmatpush1.msra.mxu0 0.0
        %1755 = vmatprep.subr.mxu0 0.0
        %1756 = vmatpush1.msra.mxu0 0.0
        %1757 = vmatprep.subr.mxu0 0.0
        %1758 = vmatpush1.msra.mxu0 0.0
        %1759 = vmatprep.subr.mxu0 0.0
        %1760 = vmatpush1.msra.mxu0 0.0
        %1761 = vmatprep.subr.mxu0 0.0
        %1762 = vmatpush1.msra.mxu0 0.0
        %1763 = vmatprep.subr.mxu0 0.0
        %1764 = vmatpush1.msra.mxu0 0.0
        %1765 = vmatprep.subr.mxu0 0.0
        %1766 = vmatpush1.msra.mxu0 0.0
        %1767 = vmatprep.subr.mxu0 0.0
        %1768 = vmatpush1.msra.mxu0 0.0
        %1769 = vmatprep.subr.mxu0 0.0
        %1770 = vmatpush1.msra.mxu0 0.0
        %1771 = vmatprep.subr.mxu0 0.0
        %1772 = vmatpush1.msra.mxu0 0.0
        %1773 = vmatprep.subr.mxu0 0.0
        %1774 = vmatpush1.msra.mxu0 0.0
        %1775 = vmatprep.subr.mxu0 0.0
        %1776 = vmatpush1.msra.mxu0 0.0
        %1777 = vmatprep.subr.mxu0 0.0
        %1778 = vmatpush1.msra.mxu0 0.0
        %1779 = vmatprep.subr.mxu0 0.0
        %1780 = vmatpush1.msra.mxu0 0.0
        %1781 = vmatprep.subr.mxu0 0.0
        %1782 = vmatpush1.msra.mxu0 0.0
        %1783 = vmatprep.subr.mxu0 0.0
        %1784 = vmatpush1.msra.mxu0 0.0
        %1785 = vmatprep.subr.mxu0 0.0
        %1786 = vmatpush1.msra.mxu0 0.0
        %1787 = vmatprep.subr.mxu0 0.0
        %1788 = vmatpush1.msra.mxu0 0.0
        %1789 = vmatprep.subr.mxu0 0.0
        %1790 = vmatpush1.msra.mxu0 0.0
        %1791 = vmatprep.subr.mxu0 0.0
        %1792 = vmatpush1.msra.mxu0 0.0
        %1793 = vmatprep.subr.mxu0 0.0
        %1794 = vmatpush1.msra.mxu0 0.0
        %1795 = vmatprep.subr.mxu0 0.0
        %1796 = vmatpush1.msra.mxu0 0.0
        %1797 = vmatprep.subr.mxu0 0.0
        %1798 = vmatpush1.msra.mxu0 0.0
        %1799 = vmatprep.mubr.f32.mxu0 0.0
        %1800 = vmatmul.mubr.f32.gmra.mrb[0].mxu0 %v1733
        %v1801 = vpop.f32.mrb[0].mxu0
        %v1802 = vadd.f32 0.0, %v1801
        %v1803 = vpop.f32.mrb[0].mxu0
        %1804 = vdwg.mxu0
        %v1805 = vadd.f32 %v1212, %v1291
        %v1806 = vadd.f32 %v1213, %v1364
        %v1807 = vadd.f32 %v1214, %v1437
        %v1808 = vadd.f32 %v1215, %v1510
        %v1809 = vadd.f32 %v1216, %v1583
        %v1810 = vadd.f32 %v1217, %v1656
        %v1811 = vadd.f32 %v1218, %v1729
        %v1812 = vadd.f32 %v1219, %v1802
        %1813 = vst [vmem:[#allocation4] sm:$0x1] %v1805
        %1814 = vst [vmem:[#allocation4 + $0x1] sm:$0x1] %v1806
        %1815 = vst [vmem:[#allocation4 + $0x2] sm:$0x1] %v1807
        %1816 = vst [vmem:[#allocation4 + $0x3] sm:$0x1] %v1808
        %1817 = vst [vmem:[#allocation4 + $0x4] sm:$0x1] %v1809
        %1818 = vst [vmem:[#allocation4 + $0x5] sm:$0x1] %v1810
        %1819 = vst [vmem:[#allocation4 + $0x6] sm:$0x1] %v1811
        %1820 = vst [vmem:[#allocation4 + $0x7] sm:$0x1] %v1812
        %1821 = vst.msk [vmem:[#allocation2] sm:$0x1] %vm1123, %v947
        %1822 = vst.msk [vmem:[#allocation2 + $0x1] sm:$0x1] %vm1123, %v948
        %1823 = vst.msk [vmem:[#allocation2 + $0x2] sm:$0x1] %vm1123, %v949
        %1824 = vst.msk [vmem:[#allocation2 + $0x3] sm:$0x1] %vm1123, %v950
        %1825 = vst.msk [vmem:[#allocation2 + $0x4] sm:$0x1] %vm1123, %v951
        %1826 = vst.msk [vmem:[#allocation2 + $0x5] sm:$0x1] %vm1123, %v952
        %1827 = vst.msk [vmem:[#allocation2 + $0x6] sm:$0x1] %vm1123, %v953
        %1828 = vst.msk [vmem:[#allocation2 + $0x7] sm:$0x1] %vm1123, %v954
        %p1829 = scmp.eq.s32.totalorder %s29, 1
        // Predicated region
        $region61: #{tpu_custom_call.1} parent=43 // pred_check
          %p1830 = pneg %p1829
        $region62: #{tpu_custom_call.1} parent=43 // pred_check_branch
          %1832 = sbr.rel (%p1830) target = $region64
        $region63: #{tpu_custom_call.1} parent=43 // pred_region
          %v1833 = vld [vmem:[#allocation4] sm:$0x1]
          %v1834 = vld [vmem:[#allocation4 + $0x1] sm:$0x1]
          %v1835 = vld [vmem:[#allocation4 + $0x2] sm:$0x1]
          %v1836 = vld [vmem:[#allocation4 + $0x3] sm:$0x1]
          %v1837 = vld [vmem:[#allocation4 + $0x4] sm:$0x1]
          %v1838 = vld [vmem:[#allocation4 + $0x5] sm:$0x1]
          %v1839 = vld [vmem:[#allocation4 + $0x6] sm:$0x1]
          %v1840 = vld [vmem:[#allocation4 + $0x7] sm:$0x1]
          %v1841 = vld [vmem:[#allocation3] sm:$0x1]
          %v1842 = vld [vmem:[#allocation3 + $0x1] sm:$0x1]
          %v1843 = vld [vmem:[#allocation3 + $0x2] sm:$0x1]
          %v1844 = vld [vmem:[#allocation3 + $0x3] sm:$0x1]
          %v1845 = vld [vmem:[#allocation3 + $0x4] sm:$0x1]
          %v1846 = vld [vmem:[#allocation3 + $0x5] sm:$0x1]
          %v1847 = vld [vmem:[#allocation3 + $0x6] sm:$0x1]
          %v1848 = vld [vmem:[#allocation3 + $0x7] sm:$0x1]
          %v1849 = vrcp.pop %v1841
          %v1850 = vrcp.pop %v1842
          %v1851 = vrcp.pop %v1843
          %v1852 = vrcp.pop %v1844
          %v1853 = vrcp.pop %v1845
          %v1854 = vrcp.pop %v1846
          %v1855 = vrcp.pop %v1847
          %v1856 = vrcp.pop %v1848
          %1858 = vset.pattern.permute.xlu0 0
          %1859 = vperm.xlu0 %1858, %v1849
          %v1860 = vpop.permute.xlu0 %1859
          %v1862 = vlaneseq
          %v1863 = vshrl.u32 %v1862, 7
          %v1864 = vsub.s32 0, %v1863
          %v1865 = vrot.slane %v1860, %v1864
          %1867 = vset.pattern.permute.xlu0 0
          %1868 = vperm.xlu0 %1867, %v1850
          %v1869 = vpop.permute.xlu0 %1868
          %v1871 = vlaneseq
          %v1872 = vshrl.u32 %v1871, 7
          %v1873 = vsub.s32 0, %v1872
          %v1874 = vrot.slane %v1869, %v1873
          %1876 = vset.pattern.permute.xlu0 0
          %1877 = vperm.xlu0 %1876, %v1851
          %v1878 = vpop.permute.xlu0 %1877
          %v1880 = vlaneseq
          %v1881 = vshrl.u32 %v1880, 7
          %v1882 = vsub.s32 0, %v1881
          %v1883 = vrot.slane %v1878, %v1882
          %1885 = vset.pattern.permute.xlu0 0
          %1886 = vperm.xlu0 %1885, %v1852
          %v1887 = vpop.permute.xlu0 %1886
          %v1889 = vlaneseq
          %v1890 = vshrl.u32 %v1889, 7
          %v1891 = vsub.s32 0, %v1890
          %v1892 = vrot.slane %v1887, %v1891
          %1894 = vset.pattern.permute.xlu0 0
          %1895 = vperm.xlu0 %1894, %v1853
          %v1896 = vpop.permute.xlu0 %1895
          %v1898 = vlaneseq
          %v1899 = vshrl.u32 %v1898, 7
          %v1900 = vsub.s32 0, %v1899
          %v1901 = vrot.slane %v1896, %v1900
          %1903 = vset.pattern.permute.xlu0 0
          %1904 = vperm.xlu0 %1903, %v1854
          %v1905 = vpop.permute.xlu0 %1904
          %v1907 = vlaneseq
          %v1908 = vshrl.u32 %v1907, 7
          %v1909 = vsub.s32 0, %v1908
          %v1910 = vrot.slane %v1905, %v1909
          %1912 = vset.pattern.permute.xlu0 0
          %1913 = vperm.xlu0 %1912, %v1855
          %v1914 = vpop.permute.xlu0 %1913
          %v1916 = vlaneseq
          %v1917 = vshrl.u32 %v1916, 7
          %v1918 = vsub.s32 0, %v1917
          %v1919 = vrot.slane %v1914, %v1918
          %1921 = vset.pattern.permute.xlu0 0
          %1922 = vperm.xlu0 %1921, %v1856
          %v1923 = vpop.permute.xlu0 %1922
          %v1925 = vlaneseq
          %v1926 = vshrl.u32 %v1925, 7
          %v1927 = vsub.s32 0, %v1926
          %v1928 = vrot.slane %v1923, %v1927
          %v1929 = vmul.f32 %v1833, %v1865
          %v1930 = vmul.f32 %v1834, %v1874
          %v1931 = vmul.f32 %v1835, %v1883
          %v1932 = vmul.f32 %v1836, %v1892
          %v1933 = vmul.f32 %v1837, %v1901
          %v1934 = vmul.f32 %v1838, %v1910
          %v1935 = vmul.f32 %v1839, %v1919
          %v1936 = vmul.f32 %v1840, %v1928
          %v1937 = vld [vmem:[#allocation8] sm:$0xff]
          %v1938 = vld [vmem:[#allocation8 + $0x8] sm:$0xff]
          %v1939 = vld [vmem:[#allocation8 + $0x10] sm:$0xff]
          %v1940 = vld [vmem:[#allocation8 + $0x18] sm:$0xff]
          %v1941 = vld [vmem:[#allocation8 + $0x20] sm:$0xff]
          %v1942 = vld [vmem:[#allocation8 + $0x28] sm:$0xff]
          %v1943 = vld [vmem:[#allocation8 + $0x30] sm:$0xff]
          %v1944 = vld [vmem:[#allocation8 + $0x38] sm:$0xff]
          %v1945 = vld [vmem:[#allocation8 + $0x40] sm:$0xff]
          %v1946 = vld [vmem:[#allocation8 + $0x48] sm:$0xff]
          %v1947 = vld [vmem:[#allocation8 + $0x50] sm:$0xff]
          %v1948 = vld [vmem:[#allocation8 + $0x58] sm:$0xff]
          %v1949 = vld [vmem:[#allocation8 + $0x60] sm:$0xff]
          %v1950 = vld [vmem:[#allocation8 + $0x68] sm:$0xff]
          %v1951 = vld [vmem:[#allocation8 + $0x70] sm:$0xff]
          %v1952 = vld [vmem:[#allocation8 + $0x78] sm:$0xff]
          %v1953 = vld [vmem:[%s3] sm:$0x1]
          %v1955 = vlaneseq
          %v1956 = vshrl.u32 %v1955, 7
          %v1957 = vsub.s32 0, %v1956
          %v1958 = vrot.slane %v1953, %v1957
          %v1968 = vcombine.low %v1929, %v1930
          %v1969 = vcombine.low %v1931, %v1932
          %v1970 = vcombine.low %v1933, %v1934
          %v1971 = vcombine.low %v1935, %v1936
          %v1973 = vunpack.c.l.s4 1966171168
          %v1974 = vunpack.c.0.s8 %v1973
          %v1975 = vlaneseq
          %v1976 = vshrl.u32 %v1975, 7
          %v1977 = vsub.s32 %v1974, %v1976
          %v1978 = vrot.slane %v1968, %v1977
          %v1980 = vunpack.c.l.s4 1966171168
          %v1981 = vunpack.c.0.s8 %v1980
          %v1982 = vlaneseq
          %v1983 = vshrl.u32 %v1982, 7
          %v1984 = vsub.s32 %v1981, %v1983
          %v1985 = vrot.slane %v1969, %v1984
          %v1987 = vunpack.c.l.s4 1966171168
          %v1988 = vunpack.c.0.s8 %v1987
          %v1989 = vlaneseq
          %v1990 = vshrl.u32 %v1989, 7
          %v1991 = vsub.s32 %v1988, %v1990
          %v1992 = vrot.slane %v1970, %v1991
          %v1994 = vunpack.c.l.s4 1966171168
          %v1995 = vunpack.c.0.s8 %v1994
          %v1996 = vlaneseq
          %v1997 = vshrl.u32 %v1996, 7
          %v1998 = vsub.s32 %v1995, %v1997
          %v1999 = vrot.slane %v1971, %v1998
          %v2000 = vcombine.low %v1978, %v1985
          %v2001 = vcombine.low %v1992, %v1999
          %v2003 = vunpack.c.l.s4 1966171168
          %v2004 = vunpack.c.0.s8 %v2003
          %v2005 = vlaneseq
          %v2006 = vshrl.u32 %v2005, 7
          %v2007 = vsub.s32 %v2004, %v2006
          %v2008 = vrot.slane %v2000, %v2007
          %v2010 = vunpack.c.l.s4 1966171168
          %v2011 = vunpack.c.0.s8 %v2010
          %v2012 = vlaneseq
          %v2013 = vshrl.u32 %v2012, 7
          %v2014 = vsub.s32 %v2011, %v2013
          %v2015 = vrot.slane %v2001, %v2014
          %v2016 = vcombine.low %v2008, %v2015
          %2018 = vmatprep.subr.mxu0 0.0
          %2019 = vmatpush1.msra.mxu0 %v1937
          %2020 = vmatprep.subr.mxu0 0.0
          %2021 = vmatpush1.msra.mxu0 %v1938
          %2022 = vmatprep.subr.mxu0 0.0
          %2023 = vmatpush1.msra.mxu0 %v1939
          %2024 = vmatprep.subr.mxu0 0.0
          %2025 = vmatpush1.msra.mxu0 %v1940
          %2026 = vmatprep.subr.mxu0 0.0
          %2027 = vmatpush1.msra.mxu0 %v1941
          %2028 = vmatprep.subr.mxu0 0.0
          %2029 = vmatpush1.msra.mxu0 %v1942
          %2030 = vmatprep.subr.mxu0 0.0
          %2031 = vmatpush1.msra.mxu0 %v1943
          %2032 = vmatprep.subr.mxu0 0.0
          %2033 = vmatpush1.msra.mxu0 %v1944
          %2034 = vmatprep.subr.mxu0 0.0
          %2035 = vmatpush1.msra.mxu0 %v1945
          %2036 = vmatprep.subr.mxu0 0.0
          %2037 = vmatpush1.msra.mxu0 %v1946
          %2038 = vmatprep.subr.mxu0 0.0
          %2039 = vmatpush1.msra.mxu0 %v1947
          %2040 = vmatprep.subr.mxu0 0.0
          %2041 = vmatpush1.msra.mxu0 %v1948
          %2042 = vmatprep.subr.mxu0 0.0
          %2043 = vmatpush1.msra.mxu0 %v1949
          %2044 = vmatprep.subr.mxu0 0.0
          %2045 = vmatpush1.msra.mxu0 %v1950
          %2046 = vmatprep.subr.mxu0 0.0
          %2047 = vmatpush1.msra.mxu0 %v1951
          %2048 = vmatprep.subr.mxu0 0.0
          %2049 = vmatpush1.msra.mxu0 %v1952
          %2050 = vmatprep.subr.mxu0 0.0
          %2051 = vmatpush1.msra.mxu0 0.0
          %2052 = vmatprep.subr.mxu0 0.0
          %2053 = vmatpush1.msra.mxu0 0.0
          %2054 = vmatprep.subr.mxu0 0.0
          %2055 = vmatpush1.msra.mxu0 0.0
          %2056 = vmatprep.subr.mxu0 0.0
          %2057 = vmatpush1.msra.mxu0 0.0
          %2058 = vmatprep.subr.mxu0 0.0
          %2059 = vmatpush1.msra.mxu0 0.0
          %2060 = vmatprep.subr.mxu0 0.0
          %2061 = vmatpush1.msra.mxu0 0.0
          %2062 = vmatprep.subr.mxu0 0.0
          %2063 = vmatpush1.msra.mxu0 0.0
          %2064 = vmatprep.subr.mxu0 0.0
          %2065 = vmatpush1.msra.mxu0 0.0
          %2066 = vmatprep.subr.mxu0 0.0
          %2067 = vmatpush1.msra.mxu0 0.0
          %2068 = vmatprep.subr.mxu0 0.0
          %2069 = vmatpush1.msra.mxu0 0.0
          %2070 = vmatprep.subr.mxu0 0.0
          %2071 = vmatpush1.msra.mxu0 0.0
          %2072 = vmatprep.subr.mxu0 0.0
          %2073 = vmatpush1.msra.mxu0 0.0
          %2074 = vmatprep.subr.mxu0 0.0
          %2075 = vmatpush1.msra.mxu0 0.0
          %2076 = vmatprep.subr.mxu0 0.0
          %2077 = vmatpush1.msra.mxu0 0.0
          %2078 = vmatprep.subr.mxu0 0.0
          %2079 = vmatpush1.msra.mxu0 0.0
          %2080 = vmatprep.subr.mxu0 0.0
          %2081 = vmatpush1.msra.mxu0 0.0
          %2082 = vmatprep.mubr.f32.mxu0 0.0
          %2083 = vmatmul.mubr.f32.gmra.mrb[0].mxu0 %v2016
          %v2084 = vpop.f32.mrb[0].mxu0
          %v2085 = vadd.f32 %v1958, %v2084
          %v2086 = vpop.f32.mrb[0].mxu0
          %2087 = vdwg.mxu0
          %v2088 = vmul.f32 %v2085, 0.5
          %v2089 = vmul.f32 %v2085, 0.70710677
          %v2090 = verf.f32.pop %v2089
          %v2091 = vadd.f32 %v2090, 1.0
          %v2092 = vmul.f32 %v2088, %v2091
          %v2093 = vld [vmem:[#allocation10] sm:$0xff]
          %v2094 = vld [vmem:[#allocation10 + $0x8] sm:$0xff]
          %v2095 = vld [vmem:[#allocation10 + $0x10] sm:$0xff]
          %v2096 = vld [vmem:[#allocation10 + $0x18] sm:$0xff]
          %v2097 = vld [vmem:[#allocation10 + $0x20] sm:$0xff]
          %v2098 = vld [vmem:[#allocation10 + $0x28] sm:$0xff]
          %v2099 = vld [vmem:[#allocation10 + $0x30] sm:$0xff]
          %v2100 = vld [vmem:[#allocation10 + $0x38] sm:$0xff]
          %v2101 = vld [vmem:[#allocation10 + $0x40] sm:$0xff]
          %v2102 = vld [vmem:[#allocation10 + $0x48] sm:$0xff]
          %v2103 = vld [vmem:[#allocation10 + $0x50] sm:$0xff]
          %v2104 = vld [vmem:[#allocation10 + $0x58] sm:$0xff]
          %v2105 = vld [vmem:[#allocation10 + $0x60] sm:$0xff]
          %v2106 = vld [vmem:[#allocation10 + $0x68] sm:$0xff]
          %v2107 = vld [vmem:[#allocation10 + $0x70] sm:$0xff]
          %v2108 = vld [vmem:[#allocation10 + $0x78] sm:$0xff]
          %v2109 = vld [vmem:[%s5] sm:$0x1]
          %v2111 = vlaneseq
          %v2112 = vshrl.u32 %v2111, 7
          %v2113 = vsub.s32 0, %v2112
          %v2114 = vrot.slane %v2109, %v2113
          %2116 = vmatprep.subr.mxu0 0.0
          %2117 = vmatpush1.msra.mxu0 %v2093
          %2118 = vmatprep.subr.mxu0 0.0
          %2119 = vmatpush1.msra.mxu0 %v2094
          %2120 = vmatprep.subr.mxu0 0.0
          %2121 = vmatpush1.msra.mxu0 %v2095
          %2122 = vmatprep.subr.mxu0 0.0
          %2123 = vmatpush1.msra.mxu0 %v2096
          %2124 = vmatprep.subr.mxu0 0.0
          %2125 = vmatpush1.msra.mxu0 %v2097
          %2126 = vmatprep.subr.mxu0 0.0
          %2127 = vmatpush1.msra.mxu0 %v2098
          %2128 = vmatprep.subr.mxu0 0.0
          %2129 = vmatpush1.msra.mxu0 %v2099
          %2130 = vmatprep.subr.mxu0 0.0
          %2131 = vmatpush1.msra.mxu0 %v2100
          %2132 = vmatprep.subr.mxu0 0.0
          %2133 = vmatpush1.msra.mxu0 %v2101
          %2134 = vmatprep.subr.mxu0 0.0
          %2135 = vmatpush1.msra.mxu0 %v2102
          %2136 = vmatprep.subr.mxu0 0.0
          %2137 = vmatpush1.msra.mxu0 %v2103
          %2138 = vmatprep.subr.mxu0 0.0
          %2139 = vmatpush1.msra.mxu0 %v2104
          %2140 = vmatprep.subr.mxu0 0.0
          %2141 = vmatpush1.msra.mxu0 %v2105
          %2142 = vmatprep.subr.mxu0 0.0
          %2143 = vmatpush1.msra.mxu0 %v2106
          %2144 = vmatprep.subr.mxu0 0.0
          %2145 = vmatpush1.msra.mxu0 %v2107
          %2146 = vmatprep.subr.mxu0 0.0
          %2147 = vmatpush1.msra.mxu0 %v2108
          %2148 = vmatprep.subr.mxu0 0.0
          %2149 = vmatpush1.msra.mxu0 0.0
          %2150 = vmatprep.subr.mxu0 0.0
          %2151 = vmatpush1.msra.mxu0 0.0
          %2152 = vmatprep.subr.mxu0 0.0
          %2153 = vmatpush1.msra.mxu0 0.0
          %2154 = vmatprep.subr.mxu0 0.0
          %2155 = vmatpush1.msra.mxu0 0.0
          %2156 = vmatprep.subr.mxu0 0.0
          %2157 = vmatpush1.msra.mxu0 0.0
          %2158 = vmatprep.subr.mxu0 0.0
          %2159 = vmatpush1.msra.mxu0 0.0
          %2160 = vmatprep.subr.mxu0 0.0
          %2161 = vmatpush1.msra.mxu0 0.0
          %2162 = vmatprep.subr.mxu0 0.0
          %2163 = vmatpush1.msra.mxu0 0.0
          %2164 = vmatprep.subr.mxu0 0.0
          %2165 = vmatpush1.msra.mxu0 0.0
          %2166 = vmatprep.subr.mxu0 0.0
          %2167 = vmatpush1.msra.mxu0 0.0
          %2168 = vmatprep.subr.mxu0 0.0
          %2169 = vmatpush1.msra.mxu0 0.0
          %2170 = vmatprep.subr.mxu0 0.0
          %2171 = vmatpush1.msra.mxu0 0.0
          %2172 = vmatprep.subr.mxu0 0.0
          %2173 = vmatpush1.msra.mxu0 0.0
          %2174 = vmatprep.subr.mxu0 0.0
          %2175 = vmatpush1.msra.mxu0 0.0
          %2176 = vmatprep.subr.mxu0 0.0
          %2177 = vmatpush1.msra.mxu0 0.0
          %2178 = vmatprep.subr.mxu0 0.0
          %2179 = vmatpush1.msra.mxu0 0.0
          %2180 = vmatprep.mubr.f32.mxu0 0.0
          %2181 = vmatmul.mubr.f32.gmra.mrb[0].mxu0 %v2092
          %v2182 = vpop.f32.mrb[0].mxu0
          %v2183 = vadd.f32 %v2114, %v2182
          %v2184 = vpop.f32.mrb[0].mxu0
          %2185 = vdwg.mxu0
          %v2186 = vsub.f32 0.0, %v2183
          %v2187 = vmul.f32 %v2186, 1.442695
          %v2188 = vpow.pop %v2187
          %v2189 = vadd.f32 %v2188, 1.0
          %v2190 = vrcp.pop %v2189
          %v2191 = vmul.f32 1.0, %v2190
          %2192 = vst [vmem:[%s314] sm:$0xff] %v2191
        $region64: #{tpu_custom_call.1} parent=43 // pred_fallthru
          _
        %s2193 = sand.u32 %s177, 1
        %s2194 = scalar_lea.sflag [#allocation7], %s2193
        %s2195 = sand.u32 %s177, 1
        %s2196 = smul.addr %s2195, 8
        %s2197 = scalar_lea.vmem [#allocation11], %s2196
        // Predicated region
        $region65: #{tpu_custom_call.1} parent=43 // pred_check
          %p2198 = pneg %p187
        $region66: #{tpu_custom_call.1} parent=43 // pred_check_branch
          %2200 = sbr.rel (%p2198) target = $region68
        $region67: #{tpu_custom_call.1} parent=43 // pred_region
          %s2202 = ssub.s32 128, 128
          %2203 = vsyncadd %s2194, %s2202
          %s2204 = smul.addr %s28, 128
          %s2205 = scalar_lea.hbm %s6, %s2204
          %s2207 = sshll.u32 %s2197, 4
          %s2208 = int_to_ptr.vmem [resolvable:$true] %s2207
          %2210 = dma.vmem_to_hbm [thread:$0]  %s2208, 128, %s2205, %s2194
        $region68: #{tpu_custom_call.1} parent=43 // pred_fallthru
          _
      $region44: #{tpu_custom_call.1} parent=5 // pred_fallthru
        _
      %p2211 = scmp.le.s32.totalorder 2, %s19
      // Predicated region
      $region69: #{tpu_custom_call.1} parent=5 // pred_check
        %p2212 = pneg %p2211
      $region70: #{tpu_custom_call.1} parent=5 // pred_check_branch
        %2214 = sbr.rel (%p2212) target = $region72
      $region71: #{tpu_custom_call.1} parent=5 // pred_region
        %s2215 = ssub.s32 %s19, 2
        // Predicated region
        $region73: #{tpu_custom_call.1} parent=71 // pred_check
          %p2216 = pneg %p193
        $region74: #{tpu_custom_call.1} parent=71 // pred_check_branch
          %2218 = sbr.rel (%p2216) target = $region76
        $region75: #{tpu_custom_call.1} parent=71 // pred_region
          %s2219 = sand.u32 %s178, 1
          %s2220 = scalar_lea.sflag [#allocation7], %s2219
          %s2221 = sand.u32 %s178, 1
          %s2222 = smul.addr %s2221, 8
          %s2223 = scalar_lea.vmem [#allocation11], %s2222
          %2224 = dma.done %s2220, 128
        $region76: #{tpu_custom_call.1} parent=71 // pred_fallthru
          _
      $region72: #{tpu_custom_call.1} parent=5 // pred_fallthru
        _
    $region6: #{tpu_custom_call.1} parent=1 // loop_footer
      %s23 = sadd.s32 1, %s19
    $region7: #{tpu_custom_call.1} parent=1 // loop_footer_branch
      %18 = sbr.rel target = $region3
    $region8: #{tpu_custom_call.1} parent=1 // loop_exit
      _
    %2225 = vsyncpa [#allocation6], 1
    %s2226 = scalar_lea.sflag [#allocation6], 1
    %2227 = vsyncpa %s2226, 1
    %2228 = vsyncpa [#allocation9], 1
    %2229 = vsyncpa [#allocation7], 1
    %s2230 = scalar_lea.sflag [#allocation7], 1
    %2231 = vsyncpa %s2230, 1

</llo_original>
